<compile_context>
chip_gen: v7x
topology: tpu7x:2x2x1
jax: 0.10.0
libtpu: 0.0.40
codegen_flags: <defaults>
</compile_context>

<pallas_src>
import functools

import jax
import jax.numpy as jnp
from jax.experimental import pallas as pl
from jax.experimental.pallas import tpu as pltpu


_LANES = 128
_SUBLANES = 8
_TARGET_BLOCK_BYTES = 1 << 20     # ~1 MiB f32 per input block (≈2048 rows @ 128 lanes)
_MAX_BLOCK_BYTES = 4 << 20        # fall back if even an 8-row block exceeds this
_MAX_TILE_ROWS = 2048
_SMALL_FALLBACK = 64 * 1024       # below this a Pallas launch is pure overhead
_NUM_SPLITS = 2                   # v7x: shard the reduction across both TensorCores


def _rmse_log_kernel(out_ref, lab_ref, part_ref, *, tile_rows, cols, rows,
                     tiles_per_split, ragged):
    """Accumulate sum((log(out) - log(label))**2) over one (tile_rows, cols) tile.

    part_ref : (1, 8, cols) f32 output block, resident across the reduction
               ("arbitrary") axis -> used directly as the accumulator.
    """
    c = pl.program_id(0)            # core split ("parallel")
    i = pl.program_id(1)            # row-tile step ("arbitrary")

    @pl.when(i == 0)
    def _init():
        part_ref[...] = jnp.zeros_like(part_ref)

    def _accumulate(row_mask):
        o = out_ref[...].astype(jnp.float32)
        l = lab_ref[...].astype(jnp.float32)
        if row_mask is not None:
            # Mask BEFORE the log: out-of-range rows hold garbage (possibly <= 0).
            o = jnp.where(row_mask, o, 1.0)
            l = jnp.where(row_mask, l, 1.0)
        d = jnp.log(o) - jnp.log(l)
        d2 = d * d
        # Sublane-tile-aligned fold (tile_rows, cols) -> (8, cols): pure per-vreg
        # VPU adds (no cross-lane work), keeps the accumulator at ~a vreg row and
        # off the hot loop's vld/vst slots.  Cross-lane reduce deferred to wrapper.
        part = jnp.sum(d2.reshape(tile_rows // _SUBLANES, _SUBLANES, cols), axis=0)
        part_ref[...] += part[None]

    if ragged:
        row_start = (c * tiles_per_split + i) * tile_rows
        is_partial = row_start + tile_rows > rows

        @pl.when(jnp.logical_not(is_partial))
        def _full():
            _accumulate(None)

        @pl.when(is_partial)
        def _partial():
            rid = row_start + jax.lax.broadcasted_iota(jnp.int32, (tile_rows, cols), 0)
            _accumulate(rid < rows)
    else:
        _accumulate(None)


def _reference(out, label):
    d = jnp.log(out.astype(jnp.float32)) - jnp.log(label.astype(jnp.float32))
    return jnp.sqrt(jnp.mean(d * d))


def rmse_loss(out, label):
    """Equivalent of torch.sqrt(nn.MSELoss()(out.float().log(), label.float().log()))."""
    assert out.shape == label.shape, (out.shape, label.shape)
    n = int(out.size)
    assert n > 0

    # Small inputs: XLA's fused elementwise+reduce is already at roofline.
    if n < _SMALL_FALLBACK:
        return _reference(out, label)

    # Present the data in its native layout (no jnp.pad, no lane relayout copy).
    if out.ndim >= 2:
        cols = out.shape[-1]
        rows = n // cols
    else:
        rows, cols = 1, n
    if cols < _LANES:
        # Lane-sparse layout: let XLA handle it.  # TODO(synk): column-tiling path.
        return _reference(out, label)

    cols_padded = pl.cdiv(cols, _LANES) * _LANES
    tile_rows = (_TARGET_BLOCK_BYTES // (cols_padded * 4)) // _SUBLANES * _SUBLANES
    tile_rows = max(_SUBLANES, min(tile_rows, _MAX_TILE_ROWS))
    rows_up = pl.cdiv(rows, _SUBLANES) * _SUBLANES
    tile_rows = min(tile_rows, rows_up)
    if tile_rows * cols_padded * 4 > _MAX_BLOCK_BYTES:
        return _reference(out, label)

    n_tiles = pl.cdiv(rows, tile_rows)
    num_splits = _NUM_SPLITS if n_tiles >= _NUM_SPLITS else 1
    tiles_per_split = pl.cdiv(n_tiles, num_splits)
    # Masking needed iff the last real tile is partial, or a split owns a fully
    # out-of-range (clamped, zero-contribution) tile.
    ragged = (rows % tile_rows != 0) or (tiles_per_split * num_splits != n_tiles)

    out2 = out.reshape(rows, cols)
    lab2 = label.reshape(rows, cols)

    def in_index(c, i, tps=tiles_per_split, last=n_tiles - 1):
        return (jnp.minimum(c * tps + i, last), 0)

    kernel = functools.partial(
        _rmse_log_kernel, tile_rows=tile_rows, cols=cols, rows=rows,
        tiles_per_split=tiles_per_split, ragged=ragged)

    item = jnp.dtype(out.dtype).itemsize + jnp.dtype(label.dtype).itemsize

    partials = pl.pallas_call(
        kernel,
        out_shape=jax.ShapeDtypeStruct((num_splits, _SUBLANES, cols), jnp.float32),
        grid=(num_splits, tiles_per_split),
        in_specs=[
            pl.BlockSpec((tile_rows, cols), in_index),
            pl.BlockSpec((tile_rows, cols), in_index),
        ],
        out_specs=pl.BlockSpec((1, _SUBLANES, cols), lambda c, i: (c, 0, 0)),
        compiler_params=pltpu.CompilerParams(
            dimension_semantics=("parallel", "arbitrary"),
        ),
        cost_estimate=pl.CostEstimate(
            flops=4 * n,
            transcendentals=2 * n,
            bytes_accessed=n * item + num_splits * _SUBLANES * cols * 4,
        ),
    )(out2, lab2)

    total = jnp.sum(partials)
    return jnp.sqrt(total / jnp.float32(n))


if __name__ == "__main__":
    key = jax.random.PRNGKey(0)
    k1, k2, k3, k4, k5, k6 = jax.random.split(key, 6)

    # 1) Module-typical tiny shape: batch of 16 house-price predictions
    #    (strictly positive, as log requires).  Uses the small-size fast path.
    out_s = jax.random.uniform(k1, (16, 1), jnp.float32, minval=50.0, maxval=500.0)
    lab_s = jax.random.uniform(k2, (16, 1), jnp.float32, minval=50.0, maxval=500.0)
    loss_s = rmse_loss(out_s, lab_s)
    jax.block_until_ready(loss_s)
    ref_s = _reference(out_s, lab_s)
    assert jnp.allclose(loss_s, ref_s, rtol=1e-5, atol=1e-6), (loss_s, ref_s)

    # 2) Pallas path: non-128-multiple lane dim + ragged (masked) row tile,
    #    single split.
    out_m = jax.random.uniform(k3, (300, 257), jnp.float32, minval=50.0, maxval=500.0)
    lab_m = jax.random.uniform(k4, (300, 257), jnp.float32, minval=50.0, maxval=500.0)
    loss_m = rmse_loss(out_m, lab_m)
    jax.block_until_ready(loss_m)
    ref_m = _reference(out_m, lab_m)
    assert jnp.allclose(loss_m, ref_m, rtol=1e-4, atol=1e-5), (loss_m, ref_m)

    # 3) Pallas path: two-way core split ("parallel" leading axis) with a ragged
    #    last tile, bf16 streaming (cast to f32 in-kernel, like out.float()).
    out_l = jax.random.uniform(k5, (1024, 384), jnp.float32, minval=50.0, maxval=500.0)
    lab_l = jax.random.uniform(k6, (1024, 384), jnp.float32, minval=50.0, maxval=500.0)
    out_b = out_l.astype(jnp.bfloat16)
    lab_b = lab_l.astype(jnp.bfloat16)
    loss_b = rmse_loss(out_b, lab_b)
    jax.block_until_ready(loss_b)
    ref_b = _reference(out_b, lab_b)
    assert jnp.allclose(loss_b, ref_b, rtol=1e-4, atol=1e-5), (loss_b, ref_b)

    print("KERNEL_OK")
</pallas_src>

<mosaic_0001>
module attributes {stable_mosaic.version = 11 : i64} {
  func.func @_rmse_log_kernel(%arg0: i32, %arg1: i32, %arg2: memref<304x257xf32, #tpu.memory_space<vmem>>, %arg3: memref<304x257xf32, #tpu.memory_space<vmem>>, %arg4: memref<1x8x257xf32, #tpu.memory_space<vmem>>) attributes {dimension_semantics = [#tpu.dimension_semantics<parallel>, #tpu.dimension_semantics<arbitrary>], iteration_bounds = array<i64: 1, 1>, scalar_prefetch = 0 : i64, scratch_operands = 0 : i64, tpu.core_type = #tpu.core_type<tc>, window_params = [{transform_indices = @transform_0, window_bounds = array<i64: 304, 257>}, {transform_indices = @transform_1, window_bounds = array<i64: 304, 257>}, {transform_indices = @transform_2, window_bounds = array<i64: 1, 8, 257>}]} {
    %c0_i32 = arith.constant 0 : i32
    %0 = arith.cmpi eq, %arg1, %c0_i32 : i32
    %1 = arith.extui %0 : i1 to i32
    %c0_i32_0 = arith.constant 0 : i32
    %2 = arith.cmpi ne, %1, %c0_i32_0 : i32
    scf.if %2 {
      %cst = arith.constant 0.000000e+00 : f32
      %13 = vector.broadcast %cst : f32 to vector<1x8x257xf32>
      %c0 = arith.constant 0 : index
      %c0_4 = arith.constant 0 : index
      %c0_5 = arith.constant 0 : index
      %14 = vector.load %arg4[%c0, %c0_4, %c0_5] : memref<1x8x257xf32, #tpu.memory_space<vmem>>, vector<1x8x257xf32>
      tpu.vector_store %arg4[%c0, %c0_4, %c0_5], %13 {strides = array<i32>} : memref<1x8x257xf32, #tpu.memory_space<vmem>>, vector<1x8x257xf32>,
    } else {
    }
    %c1_i32 = arith.constant 1 : i32
    %3 = arith.muli %arg0, %c1_i32 : i32
    %4 = arith.addi %3, %arg1 : i32
    %c304_i32 = arith.constant 304 : i32
    %5 = arith.muli %4, %c304_i32 : i32
    %c304_i32_1 = arith.constant 304 : i32
    %6 = arith.addi %5, %c304_i32_1 : i32
    %c300_i32 = arith.constant 300 : i32
    %7 = arith.cmpi sgt, %6, %c300_i32 : i32
    %true = arith.constant true
    %8 = arith.xori %7, %true : i1
    %9 = arith.extui %8 : i1 to i32
    %c0_i32_2 = arith.constant 0 : i32
    %10 = arith.cmpi ne, %9, %c0_i32_2 : i32
    scf.if %10 {
      %c0 = arith.constant 0 : index
      %c0_4 = arith.constant 0 : index
      %13 = vector.load %arg2[%c0, %c0_4] : memref<304x257xf32, #tpu.memory_space<vmem>>, vector<304x257xf32>
      %c0_5 = arith.constant 0 : index
      %c0_6 = arith.constant 0 : index
      %14 = vector.load %arg3[%c0_5, %c0_6] : memref<304x257xf32, #tpu.memory_space<vmem>>, vector<304x257xf32>
      %15 = math.log %13 : vector<304x257xf32>
      %16 = math.log %14 : vector<304x257xf32>
      %17 = arith.subf %15, %16 : vector<304x257xf32>
      %18 = arith.mulf %17, %17 : vector<304x257xf32>
      %19 = vector.shape_cast %18 : vector<304x257xf32> to vector<38x8x257xf32>
      %cst = arith.constant dense<0.000000e+00> : vector<8x257xf32>
      %20 = vector.multi_reduction <add>, %19, %cst [0] : vector<38x8x257xf32> to vector<8x257xf32>
      %c0_7 = arith.constant 0 : index
      %c0_8 = arith.constant 0 : index
      %c0_9 = arith.constant 0 : index
      %21 = vector.load %arg4[%c0_7, %c0_8, %c0_9] : memref<1x8x257xf32, #tpu.memory_space<vmem>>, vector<1x8x257xf32>
      %22 = vector.shape_cast %20 : vector<8x257xf32> to vector<1x8x257xf32>
      %23 = arith.addf %21, %22 : vector<1x8x257xf32>
      %c0_10 = arith.constant 0 : index
      %c0_11 = arith.constant 0 : index
      %c0_12 = arith.constant 0 : index
      %24 = vector.load %arg4[%c0_10, %c0_11, %c0_12] : memref<1x8x257xf32, #tpu.memory_space<vmem>>, vector<1x8x257xf32>
      tpu.vector_store %arg4[%c0_10, %c0_11, %c0_12], %23 {strides = array<i32>} : memref<1x8x257xf32, #tpu.memory_space<vmem>>, vector<1x8x257xf32>,
    } else {
    }
    %11 = arith.extui %7 : i1 to i32
    %c0_i32_3 = arith.constant 0 : i32
    %12 = arith.cmpi ne, %11, %c0_i32_3 : i32
    scf.if %12 {
      %13 = tpu.iota {dimensions = array<i32: 0>} : vector<304x257xi32>
      %14 = vector.broadcast %5 : i32 to vector<304x257xi32>
      %15 = arith.addi %14, %13 : vector<304x257xi32>
      %c300_i32_4 = arith.constant 300 : i32
      %16 = vector.broadcast %c300_i32_4 : i32 to vector<304x257xi32>
      %17 = arith.cmpi slt, %15, %16 : vector<304x257xi32>
      %c0 = arith.constant 0 : index
      %c0_5 = arith.constant 0 : index
      %18 = vector.load %arg2[%c0, %c0_5] : memref<304x257xf32, #tpu.memory_space<vmem>>, vector<304x257xf32>
      %c0_6 = arith.constant 0 : index
      %c0_7 = arith.constant 0 : index
      %19 = vector.load %arg3[%c0_6, %c0_7] : memref<304x257xf32, #tpu.memory_space<vmem>>, vector<304x257xf32>
      %cst = arith.constant 1.000000e+00 : f32
      %20 = vector.broadcast %cst : f32 to vector<304x257xf32>
      %21 = arith.select %17, %18, %20 : vector<304x257xi1>, vector<304x257xf32>
      %cst_8 = arith.constant 1.000000e+00 : f32
      %22 = vector.broadcast %cst_8 : f32 to vector<304x257xf32>
      %23 = arith.select %17, %19, %22 : vector<304x257xi1>, vector<304x257xf32>
      %24 = math.log %21 : vector<304x257xf32>
      %25 = math.log %23 : vector<304x257xf32>
      %26 = arith.subf %24, %25 : vector<304x257xf32>
      %27 = arith.mulf %26, %26 : vector<304x257xf32>
      %28 = vector.shape_cast %27 : vector<304x257xf32> to vector<38x8x257xf32>
      %cst_9 = arith.constant dense<0.000000e+00> : vector<8x257xf32>
      %29 = vector.multi_reduction <add>, %28, %cst_9 [0] : vector<38x8x257xf32> to vector<8x257xf32>
      %c0_10 = arith.constant 0 : index
      %c0_11 = arith.constant 0 : index
      %c0_12 = arith.constant 0 : index
      %30 = vector.load %arg4[%c0_10, %c0_11, %c0_12] : memref<1x8x257xf32, #tpu.memory_space<vmem>>, vector<1x8x257xf32>
      %31 = vector.shape_cast %29 : vector<8x257xf32> to vector<1x8x257xf32>
      %32 = arith.addf %30, %31 : vector<1x8x257xf32>
      %c0_13 = arith.constant 0 : index
      %c0_14 = arith.constant 0 : index
      %c0_15 = arith.constant 0 : index
      %33 = vector.load %arg4[%c0_13, %c0_14, %c0_15] : memref<1x8x257xf32, #tpu.memory_space<vmem>>, vector<1x8x257xf32>
      tpu.vector_store %arg4[%c0_13, %c0_14, %c0_15], %32 {strides = array<i32>} : memref<1x8x257xf32, #tpu.memory_space<vmem>>, vector<1x8x257xf32>,
    } else {
    }
    return
  }
  func.func @transform_0(%arg0: i32, %arg1: i32) -> (i32, i32) {
    %c1_i32 = arith.constant 1 : i32
    %0 = arith.muli %arg0, %c1_i32 : i32
    %1 = arith.addi %0, %arg1 : i32
    %c0_i32 = arith.constant 0 : i32
    %2 = arith.minsi %1, %c0_i32 : i32
    %c0_i32_0 = arith.constant 0 : i32
    %c0_i32_1 = arith.constant 0 : i32
    return %2, %c0_i32_0 : i32, i32
  }
  func.func @transform_1(%arg0: i32, %arg1: i32) -> (i32, i32) {
    %c1_i32 = arith.constant 1 : i32
    %0 = arith.muli %arg0, %c1_i32 : i32
    %1 = arith.addi %0, %arg1 : i32
    %c0_i32 = arith.constant 0 : i32
    %2 = arith.minsi %1, %c0_i32 : i32
    %c0_i32_0 = arith.constant 0 : i32
    %c0_i32_1 = arith.constant 0 : i32
    return %2, %c0_i32_0 : i32, i32
  }
  func.func @transform_2(%arg0: i32, %arg1: i32) -> (i32, i32, i32) {
    %c0_i32 = arith.constant 0 : i32
    %c0_i32_0 = arith.constant 0 : i32
    %c0_i32_1 = arith.constant 0 : i32
    return %arg0, %c0_i32, %c0_i32_0 : i32, i32, i32
  }
}

</mosaic_0001>

<llo_original>
// kernel: tpu_custom_call.1
$region0: #{tpu_custom_call.1}
  #allocation0 [shape = 'u32[]', space=smem, size = 0x4, offset = 0x4, fixed_abs, tag = 'smem constant byte address 0x4 - core index']
  #allocation1 [shape = 'u32[144,128]{1,0:T(1,128)}', space=vmem, size = 0x12000, scoped, tag = 'internal scratch']
  %s0 = inlined_call_operand.vmem [shape: f32[300,257], index: 0, kind: input, shape index: {}]
  %s1 = inlined_call_operand.vmem [shape: f32[300,257], index: 1, kind: input, shape index: {}]
  %s2 = inlined_call_operand.hbm [shape: f32[1,8,257], index: 2, kind: output, shape index: {}]
  %s3 = sld [smem:[#allocation0]]
  $region30: #{tpu_custom_call.1} parent=0
    _
  %s5 = ssub.s32 1, %s3
  %s6 = scalar_select 0, %s5, %s3
  $region1: #{tpu_custom_call.1} parent=0
    #allocation2 [shape = 'u8[12288]{0}', space=vmem, size = 0x3000, scoped, tag = 'output window, operand 0, single buffered']
    #allocation3 [shape = 's32[1]{0}', space=sflag, size = 0x4, scoped, tag = 'scoped memory for tpu_custom_call.1']
    %7 = vsyncpa [#allocation3], 0
    // Predicated region
    $region2: #{tpu_custom_call.1} parent=1 // pred_check
      _
    $region3: #{tpu_custom_call.1} parent=1 // pred_check_branch
      %9 = sbr.rel (0) target = $region5
    $region4: #{tpu_custom_call.1} parent=1 // pred_region
      %s10 = sadd.s32 0, 0
      %p11 = scmp.lt.s32.totalorder %s10, 0
      %s12 = scalar_select %p11, %s10, 0
      %s13 = smul.u32 38, %s12
      %p14 = scmp.lt.s32.totalorder %s13, 37
      %s15 = scalar_select %p14, %s13, 37
      %s16 = smul.addr %s15, 3
      %s17 = smul.addr %s16, 8
      %s18 = scalar_lea.vmem %s0, %s17
      %s19 = sadd.s32 0, 0
      %p20 = scmp.lt.s32.totalorder %s19, 0
      %s21 = scalar_select %p20, %s19, 0
      %s22 = smul.u32 38, %s21
    $region5: #{tpu_custom_call.1} parent=1 // pred_fallthru
      _
    // Predicated region
    $region6: #{tpu_custom_call.1} parent=1 // pred_check
      _
    $region7: #{tpu_custom_call.1} parent=1 // pred_check_branch
      %24 = sbr.rel (0) target = $region9
    $region8: #{tpu_custom_call.1} parent=1 // pred_region
      %s25 = sadd.s32 0, 0
      %p26 = scmp.lt.s32.totalorder %s25, 0
      %s27 = scalar_select %p26, %s25, 0
      %s28 = smul.u32 38, %s27
      %p29 = scmp.lt.s32.totalorder %s28, 37
      %s30 = scalar_select %p29, %s28, 37
      %s31 = smul.addr %s30, 3
      %s32 = smul.addr %s31, 8
      %s33 = scalar_lea.vmem %s1, %s32
      %s34 = sadd.s32 0, 0
      %p35 = scmp.lt.s32.totalorder %s34, 0
      %s36 = scalar_select %p35, %s34, 0
      %s37 = smul.u32 38, %s36
    $region9: #{tpu_custom_call.1} parent=1 // pred_fallthru
      _
    %s38 = sadd.s32 0, 0
    %p39 = scmp.lt.s32.totalorder %s38, 0
    %s40 = scalar_select %p39, %s38, 0
    %s41 = smul.u32 38, %s40
    %p42 = scmp.lt.s32.totalorder %s41, 37
    %s43 = scalar_select %p42, %s41, 37
    %s44 = smul.addr %s43, 3
    %s45 = smul.addr %s44, 8
    %s46 = scalar_lea.vmem %s0, %s45
    %s47 = sadd.s32 0, 0
    %p48 = scmp.lt.s32.totalorder %s47, 0
    %s49 = scalar_select %p48, %s47, 0
    %s50 = smul.u32 38, %s49
    %p51 = scmp.lt.s32.totalorder %s50, 37
    %s52 = scalar_select %p51, %s50, 37
    %s53 = smul.addr %s52, 3
    %s54 = smul.addr %s53, 8
    %s55 = scalar_lea.vmem %s1, %s54
    %s56 = sadd.s32 0, 0
    %p57 = scmp.lt.s32.totalorder %s56, 0
    %s58 = scalar_select %p57, %s56, 0
    %s59 = smul.u32 38, %s58
    %p60 = scmp.lt.s32.totalorder %s59, 37
    %s61 = scalar_select %p60, %s59, 37
    %s62 = smul.addr %s61, 3
    %s63 = smul.addr %s62, 8
    %s64 = scalar_lea.vmem %s0, %s63
    %s65 = sadd.s32 0, 0
    %p66 = scmp.lt.s32.totalorder %s65, 0
    %s67 = scalar_select %p66, %s65, 0
    %s68 = smul.u32 38, %s67
    %s69 = sadd.s32 0, 0
    %p70 = scmp.lt.s32.totalorder %s69, 0
    %s71 = scalar_select %p70, %s69, 0
    %s72 = smul.u32 38, %s71
    %p73 = scmp.lt.s32.totalorder %s72, 37
    %s74 = scalar_select %p73, %s72, 37
    %s75 = smul.addr %s74, 3
    %s76 = smul.addr %s75, 8
    %s77 = scalar_lea.vmem %s1, %s76
    %s78 = sadd.s32 0, 0
    %p79 = scmp.lt.s32.totalorder %s78, 0
    %s80 = scalar_select %p79, %s78, 0
    %s81 = smul.u32 38, %s80
    %p82 = scmp.eq.s32.totalorder 0, 0
    // Predicated region
    $region10: #{tpu_custom_call.1} parent=1 // pred_check
      %p83 = pneg %p82
    $region11: #{tpu_custom_call.1} parent=1 // pred_check_branch
      %85 = sbr.rel (%p83) target = $region13
    $region12: #{tpu_custom_call.1} parent=1 // pred_region
      %86 = vst [vmem:[#allocation2] sm:$0xff] 0.0
      %87 = vst [vmem:[#allocation2 + $0x8] sm:$0xff] 0.0
      %vm88 = vcmask 7168
      %89 = vst.msk [vmem:[#allocation2 + $0x10] sm:$0xff] %vm88, 0.0
    $region13: #{tpu_custom_call.1} parent=1 // pred_fallthru
      _
    %s90 = sadd.s32 0, 0
    %s91 = smul.u32 %s90, 304
    %s92 = sadd.s32 %s91, 304
    %p93 = scmp.gt.s32.totalorder %s92, 300
    %p94 = scmp.le.s32.totalorder %s92, 300
    // Predicated region
    $region14: #{tpu_custom_call.1} parent=1 // pred_check
      %p95 = pneg %p94
    $region15: #{tpu_custom_call.1} parent=1 // pred_check_branch
      %97 = sbr.rel (%p95) target = $region17
    $region16: #{tpu_custom_call.1} parent=1 // pred_region
      %v98 = vld [vmem:[%s64] sm:$0xff]
      %v99 = vld [vmem:[%s64 + $0x8] sm:$0xff]
      %v100 = vld [vmem:[%s64 + $0x10] sm:$0xff]
      %v101 = vld [vmem:[%s64 + $0x18] sm:$0xff]
      %v102 = vld [vmem:[%s64 + $0x20] sm:$0xff]
      %v103 = vld [vmem:[%s64 + $0x28] sm:$0xff]
      %v104 = vld [vmem:[%s64 + $0x30] sm:$0xff]
      %v105 = vld [vmem:[%s64 + $0x38] sm:$0xff]
      %v106 = vld [vmem:[%s64 + $0x40] sm:$0xff]
      %v107 = vld [vmem:[%s64 + $0x48] sm:$0xff]
      %v108 = vld [vmem:[%s64 + $0x50] sm:$0xff]
      %v109 = vld [vmem:[%s64 + $0x58] sm:$0xff]
      %v110 = vld [vmem:[%s64 + $0x60] sm:$0xff]
      %v111 = vld [vmem:[%s64 + $0x68] sm:$0xff]
      %v112 = vld [vmem:[%s64 + $0x70] sm:$0xff]
      %v113 = vld [vmem:[%s64 + $0x78] sm:$0xff]
      %v114 = vld [vmem:[%s64 + $0x80] sm:$0xff]
      %v115 = vld [vmem:[%s64 + $0x88] sm:$0xff]
      %v116 = vld [vmem:[%s64 + $0x90] sm:$0xff]
      %v117 = vld [vmem:[%s64 + $0x98] sm:$0xff]
      %v118 = vld [vmem:[%s64 + $0xa0] sm:$0xff]
      %v119 = vld [vmem:[%s64 + $0xa8] sm:$0xff]
      %v120 = vld [vmem:[%s64 + $0xb0] sm:$0xff]
      %v121 = vld [vmem:[%s64 + $0xb8] sm:$0xff]
      %v122 = vld [vmem:[%s64 + $0xc0] sm:$0xff]
      %v123 = vld [vmem:[%s64 + $0xc8] sm:$0xff]
      %v124 = vld [vmem:[%s64 + $0xd0] sm:$0xff]
      %v125 = vld [vmem:[%s64 + $0xd8] sm:$0xff]
      %v126 = vld [vmem:[%s64 + $0xe0] sm:$0xff]
      %v127 = vld [vmem:[%s64 + $0xe8] sm:$0xff]
      %v128 = vld [vmem:[%s64 + $0xf0] sm:$0xff]
      %v129 = vld [vmem:[%s64 + $0xf8] sm:$0xff]
      %v130 = vld [vmem:[%s64 + $0x100] sm:$0xff]
      %v131 = vld [vmem:[%s64 + $0x108] sm:$0xff]
      %v132 = vld [vmem:[%s64 + $0x110] sm:$0xff]
      %v133 = vld [vmem:[%s64 + $0x118] sm:$0xff]
      %v134 = vld [vmem:[%s64 + $0x120] sm:$0xff]
      %v135 = vld [vmem:[%s64 + $0x128] sm:$0xff]
      %v136 = vld [vmem:[%s64 + $0x130] sm:$0xff]
      %v137 = vld [vmem:[%s64 + $0x138] sm:$0xff]
      %v138 = vld [vmem:[%s64 + $0x140] sm:$0xff]
      %v139 = vld [vmem:[%s64 + $0x148] sm:$0xff]
      %v140 = vld [vmem:[%s64 + $0x150] sm:$0xff]
      %v141 = vld [vmem:[%s64 + $0x158] sm:$0xff]
      %v142 = vld [vmem:[%s64 + $0x160] sm:$0xff]
      %v143 = vld [vmem:[%s64 + $0x168] sm:$0xff]
      %v144 = vld [vmem:[%s64 + $0x170] sm:$0xff]
      %v145 = vld [vmem:[%s64 + $0x178] sm:$0xff]
      %v146 = vld [vmem:[%s64 + $0x180] sm:$0xff]
      %v147 = vld [vmem:[%s64 + $0x188] sm:$0xff]
      %v148 = vld [vmem:[%s64 + $0x190] sm:$0xff]
      %v149 = vld [vmem:[%s64 + $0x198] sm:$0xff]
      %v150 = vld [vmem:[%s64 + $0x1a0] sm:$0xff]
      %v151 = vld [vmem:[%s64 + $0x1a8] sm:$0xff]
      %v152 = vld [vmem:[%s64 + $0x1b0] sm:$0xff]
      %v153 = vld [vmem:[%s64 + $0x1b8] sm:$0xff]
      %v154 = vld [vmem:[%s64 + $0x1c0] sm:$0xff]
      %v155 = vld [vmem:[%s64 + $0x1c8] sm:$0xff]
      %v156 = vld [vmem:[%s64 + $0x1d0] sm:$0xff]
      %v157 = vld [vmem:[%s64 + $0x1d8] sm:$0xff]
      %v158 = vld [vmem:[%s64 + $0x1e0] sm:$0xff]
      %v159 = vld [vmem:[%s64 + $0x1e8] sm:$0xff]
      %v160 = vld [vmem:[%s64 + $0x1f0] sm:$0xff]
      %v161 = vld [vmem:[%s64 + $0x1f8] sm:$0xff]
      %v162 = vld [vmem:[%s64 + $0x200] sm:$0xff]
      %v163 = vld [vmem:[%s64 + $0x208] sm:$0xff]
      %v164 = vld [vmem:[%s64 + $0x210] sm:$0xff]
      %v165 = vld [vmem:[%s64 + $0x218] sm:$0xff]
      %v166 = vld [vmem:[%s64 + $0x220] sm:$0xff]
      %v167 = vld [vmem:[%s64 + $0x228] sm:$0xff]
      %v168 = vld [vmem:[%s64 + $0x230] sm:$0xff]
      %v169 = vld [vmem:[%s64 + $0x238] sm:$0xff]
      %v170 = vld [vmem:[%s64 + $0x240] sm:$0xff]
      %v171 = vld [vmem:[%s64 + $0x248] sm:$0xff]
      %v172 = vld [vmem:[%s64 + $0x250] sm:$0xff]
      %v173 = vld [vmem:[%s64 + $0x258] sm:$0xff]
      %v174 = vld [vmem:[%s64 + $0x260] sm:$0xff]
      %v175 = vld [vmem:[%s64 + $0x268] sm:$0xff]
      %v176 = vld [vmem:[%s64 + $0x270] sm:$0xff]
      %v177 = vld [vmem:[%s64 + $0x278] sm:$0xff]
      %v178 = vld [vmem:[%s64 + $0x280] sm:$0xff]
      %v179 = vld [vmem:[%s64 + $0x288] sm:$0xff]
      %v180 = vld [vmem:[%s64 + $0x290] sm:$0xff]
      %v181 = vld [vmem:[%s64 + $0x298] sm:$0xff]
      %v182 = vld [vmem:[%s64 + $0x2a0] sm:$0xff]
      %v183 = vld [vmem:[%s64 + $0x2a8] sm:$0xff]
      %v184 = vld [vmem:[%s64 + $0x2b0] sm:$0xff]
      %v185 = vld [vmem:[%s64 + $0x2b8] sm:$0xff]
      %v186 = vld [vmem:[%s64 + $0x2c0] sm:$0xff]
      %v187 = vld [vmem:[%s64 + $0x2c8] sm:$0xff]
      %v188 = vld [vmem:[%s64 + $0x2d0] sm:$0xff]
      %v189 = vld [vmem:[%s64 + $0x2d8] sm:$0xff]
      %v190 = vld [vmem:[%s64 + $0x2e0] sm:$0xff]
      %v191 = vld [vmem:[%s64 + $0x2e8] sm:$0xff]
      %v192 = vld [vmem:[%s64 + $0x2f0] sm:$0xff]
      %v193 = vld [vmem:[%s64 + $0x2f8] sm:$0xff]
      %v194 = vld [vmem:[%s64 + $0x300] sm:$0xff]
      %v195 = vld [vmem:[%s64 + $0x308] sm:$0xff]
      %v196 = vld [vmem:[%s64 + $0x310] sm:$0xff]
      %v197 = vld [vmem:[%s64 + $0x318] sm:$0xff]
      %v198 = vld [vmem:[%s64 + $0x320] sm:$0xff]
      %v199 = vld [vmem:[%s64 + $0x328] sm:$0xff]
      %v200 = vld [vmem:[%s64 + $0x330] sm:$0xff]
      %v201 = vld [vmem:[%s64 + $0x338] sm:$0xff]
      %v202 = vld [vmem:[%s64 + $0x340] sm:$0xff]
      %v203 = vld [vmem:[%s64 + $0x348] sm:$0xff]
      %v204 = vld [vmem:[%s64 + $0x350] sm:$0xff]
      %v205 = vld [vmem:[%s64 + $0x358] sm:$0xff]
      %v206 = vld [vmem:[%s64 + $0x360] sm:$0xff]
      %v207 = vld [vmem:[%s64 + $0x368] sm:$0xff]
      %v208 = vld [vmem:[%s64 + $0x370] sm:$0xff]
      %v209 = vld [vmem:[%s64 + $0x378] sm:$0xff]
      %v210 = vld [vmem:[%s64 + $0x380] sm:$0xff]
      %v211 = vld [vmem:[%s64 + $0x388] sm:$0xff]
      %v212 = vld [vmem:[%s77] sm:$0xff]
      %v213 = vld [vmem:[%s77 + $0x8] sm:$0xff]
      %v214 = vld [vmem:[%s77 + $0x10] sm:$0xff]
      %v215 = vld [vmem:[%s77 + $0x18] sm:$0xff]
      %v216 = vld [vmem:[%s77 + $0x20] sm:$0xff]
      %v217 = vld [vmem:[%s77 + $0x28] sm:$0xff]
      %v218 = vld [vmem:[%s77 + $0x30] sm:$0xff]
      %v219 = vld [vmem:[%s77 + $0x38] sm:$0xff]
      %v220 = vld [vmem:[%s77 + $0x40] sm:$0xff]
      %v221 = vld [vmem:[%s77 + $0x48] sm:$0xff]
      %v222 = vld [vmem:[%s77 + $0x50] sm:$0xff]
      %v223 = vld [vmem:[%s77 + $0x58] sm:$0xff]
      %v224 = vld [vmem:[%s77 + $0x60] sm:$0xff]
      %v225 = vld [vmem:[%s77 + $0x68] sm:$0xff]
      %v226 = vld [vmem:[%s77 + $0x70] sm:$0xff]
      %v227 = vld [vmem:[%s77 + $0x78] sm:$0xff]
      %v228 = vld [vmem:[%s77 + $0x80] sm:$0xff]
      %v229 = vld [vmem:[%s77 + $0x88] sm:$0xff]
      %v230 = vld [vmem:[%s77 + $0x90] sm:$0xff]
      %v231 = vld [vmem:[%s77 + $0x98] sm:$0xff]
      %v232 = vld [vmem:[%s77 + $0xa0] sm:$0xff]
      %v233 = vld [vmem:[%s77 + $0xa8] sm:$0xff]
      %v234 = vld [vmem:[%s77 + $0xb0] sm:$0xff]
      %v235 = vld [vmem:[%s77 + $0xb8] sm:$0xff]
      %v236 = vld [vmem:[%s77 + $0xc0] sm:$0xff]
      %v237 = vld [vmem:[%s77 + $0xc8] sm:$0xff]
      %v238 = vld [vmem:[%s77 + $0xd0] sm:$0xff]
      %v239 = vld [vmem:[%s77 + $0xd8] sm:$0xff]
      %v240 = vld [vmem:[%s77 + $0xe0] sm:$0xff]
      %v241 = vld [vmem:[%s77 + $0xe8] sm:$0xff]
      %v242 = vld [vmem:[%s77 + $0xf0] sm:$0xff]
      %v243 = vld [vmem:[%s77 + $0xf8] sm:$0xff]
      %v244 = vld [vmem:[%s77 + $0x100] sm:$0xff]
      %v245 = vld [vmem:[%s77 + $0x108] sm:$0xff]
      %v246 = vld [vmem:[%s77 + $0x110] sm:$0xff]
      %v247 = vld [vmem:[%s77 + $0x118] sm:$0xff]
      %v248 = vld [vmem:[%s77 + $0x120] sm:$0xff]
      %v249 = vld [vmem:[%s77 + $0x128] sm:$0xff]
      %v250 = vld [vmem:[%s77 + $0x130] sm:$0xff]
      %v251 = vld [vmem:[%s77 + $0x138] sm:$0xff]
      %v252 = vld [vmem:[%s77 + $0x140] sm:$0xff]
      %v253 = vld [vmem:[%s77 + $0x148] sm:$0xff]
      %v254 = vld [vmem:[%s77 + $0x150] sm:$0xff]
      %v255 = vld [vmem:[%s77 + $0x158] sm:$0xff]
      %v256 = vld [vmem:[%s77 + $0x160] sm:$0xff]
      %v257 = vld [vmem:[%s77 + $0x168] sm:$0xff]
      %v258 = vld [vmem:[%s77 + $0x170] sm:$0xff]
      %v259 = vld [vmem:[%s77 + $0x178] sm:$0xff]
      %v260 = vld [vmem:[%s77 + $0x180] sm:$0xff]
      %v261 = vld [vmem:[%s77 + $0x188] sm:$0xff]
      %v262 = vld [vmem:[%s77 + $0x190] sm:$0xff]
      %v263 = vld [vmem:[%s77 + $0x198] sm:$0xff]
      %v264 = vld [vmem:[%s77 + $0x1a0] sm:$0xff]
      %v265 = vld [vmem:[%s77 + $0x1a8] sm:$0xff]
      %v266 = vld [vmem:[%s77 + $0x1b0] sm:$0xff]
      %v267 = vld [vmem:[%s77 + $0x1b8] sm:$0xff]
      %v268 = vld [vmem:[%s77 + $0x1c0] sm:$0xff]
      %v269 = vld [vmem:[%s77 + $0x1c8] sm:$0xff]
      %v270 = vld [vmem:[%s77 + $0x1d0] sm:$0xff]
      %v271 = vld [vmem:[%s77 + $0x1d8] sm:$0xff]
      %v272 = vld [vmem:[%s77 + $0x1e0] sm:$0xff]
      %v273 = vld [vmem:[%s77 + $0x1e8] sm:$0xff]
      %v274 = vld [vmem:[%s77 + $0x1f0] sm:$0xff]
      %v275 = vld [vmem:[%s77 + $0x1f8] sm:$0xff]
      %v276 = vld [vmem:[%s77 + $0x200] sm:$0xff]
      %v277 = vld [vmem:[%s77 + $0x208] sm:$0xff]
      %v278 = vld [vmem:[%s77 + $0x210] sm:$0xff]
      %v279 = vld [vmem:[%s77 + $0x218] sm:$0xff]
      %v280 = vld [vmem:[%s77 + $0x220] sm:$0xff]
      %v281 = vld [vmem:[%s77 + $0x228] sm:$0xff]
      %v282 = vld [vmem:[%s77 + $0x230] sm:$0xff]
      %v283 = vld [vmem:[%s77 + $0x238] sm:$0xff]
      %v284 = vld [vmem:[%s77 + $0x240] sm:$0xff]
      %v285 = vld [vmem:[%s77 + $0x248] sm:$0xff]
      %v286 = vld [vmem:[%s77 + $0x250] sm:$0xff]
      %v287 = vld [vmem:[%s77 + $0x258] sm:$0xff]
      %v288 = vld [vmem:[%s77 + $0x260] sm:$0xff]
      %v289 = vld [vmem:[%s77 + $0x268] sm:$0xff]
      %v290 = vld [vmem:[%s77 + $0x270] sm:$0xff]
      %v291 = vld [vmem:[%s77 + $0x278] sm:$0xff]
      %v292 = vld [vmem:[%s77 + $0x280] sm:$0xff]
      %v293 = vld [vmem:[%s77 + $0x288] sm:$0xff]
      %v294 = vld [vmem:[%s77 + $0x290] sm:$0xff]
      %v295 = vld [vmem:[%s77 + $0x298] sm:$0xff]
      %v296 = vld [vmem:[%s77 + $0x2a0] sm:$0xff]
      %v297 = vld [vmem:[%s77 + $0x2a8] sm:$0xff]
      %v298 = vld [vmem:[%s77 + $0x2b0] sm:$0xff]
      %v299 = vld [vmem:[%s77 + $0x2b8] sm:$0xff]
      %v300 = vld [vmem:[%s77 + $0x2c0] sm:$0xff]
      %v301 = vld [vmem:[%s77 + $0x2c8] sm:$0xff]
      %v302 = vld [vmem:[%s77 + $0x2d0] sm:$0xff]
      %v303 = vld [vmem:[%s77 + $0x2d8] sm:$0xff]
      %v304 = vld [vmem:[%s77 + $0x2e0] sm:$0xff]
      %v305 = vld [vmem:[%s77 + $0x2e8] sm:$0xff]
      %v306 = vld [vmem:[%s77 + $0x2f0] sm:$0xff]
      %v307 = vld [vmem:[%s77 + $0x2f8] sm:$0xff]
      %v308 = vld [vmem:[%s77 + $0x300] sm:$0xff]
      %v309 = vld [vmem:[%s77 + $0x308] sm:$0xff]
      %v310 = vld [vmem:[%s77 + $0x310] sm:$0xff]
      %v311 = vld [vmem:[%s77 + $0x318] sm:$0xff]
      %v312 = vld [vmem:[%s77 + $0x320] sm:$0xff]
      %v313 = vld [vmem:[%s77 + $0x328] sm:$0xff]
      %v314 = vld [vmem:[%s77 + $0x330] sm:$0xff]
      %v315 = vld [vmem:[%s77 + $0x338] sm:$0xff]
      %v316 = vld [vmem:[%s77 + $0x340] sm:$0xff]
      %v317 = vld [vmem:[%s77 + $0x348] sm:$0xff]
      %v318 = vld [vmem:[%s77 + $0x350] sm:$0xff]
      %v319 = vld [vmem:[%s77 + $0x358] sm:$0xff]
      %v320 = vld [vmem:[%s77 + $0x360] sm:$0xff]
      %v321 = vld [vmem:[%s77 + $0x368] sm:$0xff]
      %v322 = vld [vmem:[%s77 + $0x370] sm:$0xff]
      %v323 = vld [vmem:[%s77 + $0x378] sm:$0xff]
      %v324 = vld [vmem:[%s77 + $0x380] sm:$0xff]
      %v325 = vld [vmem:[%s77 + $0x388] sm:$0xff]
      %v326 = vlog2.pop %v98
      %v327 = vmul.f32 %v326, 0.6931472
      %v328 = vlog2.pop %v99
      %v329 = vmul.f32 %v328, 0.6931472
      %v330 = vlog2.pop %v100
      %v331 = vmul.f32 %v330, 0.6931472
      %v332 = vlog2.pop %v101
      %v333 = vmul.f32 %v332, 0.6931472
      %v334 = vlog2.pop %v102
      %v335 = vmul.f32 %v334, 0.6931472
      %v336 = vlog2.pop %v103
      %v337 = vmul.f32 %v336, 0.6931472
      %v338 = vlog2.pop %v104
      %v339 = vmul.f32 %v338, 0.6931472
      %v340 = vlog2.pop %v105
      %v341 = vmul.f32 %v340, 0.6931472
      %v342 = vlog2.pop %v106
      %v343 = vmul.f32 %v342, 0.6931472
      %v344 = vlog2.pop %v107
      %v345 = vmul.f32 %v344, 0.6931472
      %v346 = vlog2.pop %v108
      %v347 = vmul.f32 %v346, 0.6931472
      %v348 = vlog2.pop %v109
      %v349 = vmul.f32 %v348, 0.6931472
      %v350 = vlog2.pop %v110
      %v351 = vmul.f32 %v350, 0.6931472
      %v352 = vlog2.pop %v111
      %v353 = vmul.f32 %v352, 0.6931472
      %v354 = vlog2.pop %v112
      %v355 = vmul.f32 %v354, 0.6931472
      %v356 = vlog2.pop %v113
      %v357 = vmul.f32 %v356, 0.6931472
      %v358 = vlog2.pop %v114
      %v359 = vmul.f32 %v358, 0.6931472
      %v360 = vlog2.pop %v115
      %v361 = vmul.f32 %v360, 0.6931472
      %v362 = vlog2.pop %v116
      %v363 = vmul.f32 %v362, 0.6931472
      %v364 = vlog2.pop %v117
      %v365 = vmul.f32 %v364, 0.6931472
      %v366 = vlog2.pop %v118
      %v367 = vmul.f32 %v366, 0.6931472
      %v368 = vlog2.pop %v119
      %v369 = vmul.f32 %v368, 0.6931472
      %v370 = vlog2.pop %v120
      %v371 = vmul.f32 %v370, 0.6931472
      %v372 = vlog2.pop %v121
      %v373 = vmul.f32 %v372, 0.6931472
      %v374 = vlog2.pop %v122
      %v375 = vmul.f32 %v374, 0.6931472
      %v376 = vlog2.pop %v123
      %v377 = vmul.f32 %v376, 0.6931472
      %v378 = vlog2.pop %v124
      %v379 = vmul.f32 %v378, 0.6931472
      %v380 = vlog2.pop %v125
      %v381 = vmul.f32 %v380, 0.6931472
      %v382 = vlog2.pop %v126
      %v383 = vmul.f32 %v382, 0.6931472
      %v384 = vlog2.pop %v127
      %v385 = vmul.f32 %v384, 0.6931472
      %v386 = vlog2.pop %v128
      %v387 = vmul.f32 %v386, 0.6931472
      %v388 = vlog2.pop %v129
      %v389 = vmul.f32 %v388, 0.6931472
      %v390 = vlog2.pop %v130
      %v391 = vmul.f32 %v390, 0.6931472
      %v392 = vlog2.pop %v131
      %v393 = vmul.f32 %v392, 0.6931472
      %v394 = vlog2.pop %v132
      %v395 = vmul.f32 %v394, 0.6931472
      %v396 = vlog2.pop %v133
      %v397 = vmul.f32 %v396, 0.6931472
      %v398 = vlog2.pop %v134
      %v399 = vmul.f32 %v398, 0.6931472
      %v400 = vlog2.pop %v135
      %v401 = vmul.f32 %v400, 0.6931472
      %v402 = vlog2.pop %v136
      %v403 = vmul.f32 %v402, 0.6931472
      %v404 = vlog2.pop %v137
      %v405 = vmul.f32 %v404, 0.6931472
      %v406 = vlog2.pop %v138
      %v407 = vmul.f32 %v406, 0.6931472
      %v408 = vlog2.pop %v139
      %v409 = vmul.f32 %v408, 0.6931472
      %v410 = vlog2.pop %v140
      %v411 = vmul.f32 %v410, 0.6931472
      %v412 = vlog2.pop %v141
      %v413 = vmul.f32 %v412, 0.6931472
      %v414 = vlog2.pop %v142
      %v415 = vmul.f32 %v414, 0.6931472
      %v416 = vlog2.pop %v143
      %v417 = vmul.f32 %v416, 0.6931472
      %v418 = vlog2.pop %v144
      %v419 = vmul.f32 %v418, 0.6931472
      %v420 = vlog2.pop %v145
      %v421 = vmul.f32 %v420, 0.6931472
      %v422 = vlog2.pop %v146
      %v423 = vmul.f32 %v422, 0.6931472
      %v424 = vlog2.pop %v147
      %v425 = vmul.f32 %v424, 0.6931472
      %v426 = vlog2.pop %v148
      %v427 = vmul.f32 %v426, 0.6931472
      %v428 = vlog2.pop %v149
      %v429 = vmul.f32 %v428, 0.6931472
      %v430 = vlog2.pop %v150
      %v431 = vmul.f32 %v430, 0.6931472
      %v432 = vlog2.pop %v151
      %v433 = vmul.f32 %v432, 0.6931472
      %v434 = vlog2.pop %v152
      %v435 = vmul.f32 %v434, 0.6931472
      %v436 = vlog2.pop %v153
      %v437 = vmul.f32 %v436, 0.6931472
      %v438 = vlog2.pop %v154
      %v439 = vmul.f32 %v438, 0.6931472
      %v440 = vlog2.pop %v155
      %v441 = vmul.f32 %v440, 0.6931472
      %v442 = vlog2.pop %v156
      %v443 = vmul.f32 %v442, 0.6931472
      %v444 = vlog2.pop %v157
      %v445 = vmul.f32 %v444, 0.6931472
      %v446 = vlog2.pop %v158
      %v447 = vmul.f32 %v446, 0.6931472
      %v448 = vlog2.pop %v159
      %v449 = vmul.f32 %v448, 0.6931472
      %v450 = vlog2.pop %v160
      %v451 = vmul.f32 %v450, 0.6931472
      %v452 = vlog2.pop %v161
      %v453 = vmul.f32 %v452, 0.6931472
      %v454 = vlog2.pop %v162
      %v455 = vmul.f32 %v454, 0.6931472
      %v456 = vlog2.pop %v163
      %v457 = vmul.f32 %v456, 0.6931472
      %v458 = vlog2.pop %v164
      %v459 = vmul.f32 %v458, 0.6931472
      %v460 = vlog2.pop %v165
      %v461 = vmul.f32 %v460, 0.6931472
      %v462 = vlog2.pop %v166
      %v463 = vmul.f32 %v462, 0.6931472
      %v464 = vlog2.pop %v167
      %v465 = vmul.f32 %v464, 0.6931472
      %v466 = vlog2.pop %v168
      %v467 = vmul.f32 %v466, 0.6931472
      %v468 = vlog2.pop %v169
      %v469 = vmul.f32 %v468, 0.6931472
      %v470 = vlog2.pop %v170
      %v471 = vmul.f32 %v470, 0.6931472
      %v472 = vlog2.pop %v171
      %v473 = vmul.f32 %v472, 0.6931472
      %v474 = vlog2.pop %v172
      %v475 = vmul.f32 %v474, 0.6931472
      %v476 = vlog2.pop %v173
      %v477 = vmul.f32 %v476, 0.6931472
      %v478 = vlog2.pop %v174
      %v479 = vmul.f32 %v478, 0.6931472
      %v480 = vlog2.pop %v175
      %v481 = vmul.f32 %v480, 0.6931472
      %v482 = vlog2.pop %v176
      %v483 = vmul.f32 %v482, 0.6931472
      %v484 = vlog2.pop %v177
      %v485 = vmul.f32 %v484, 0.6931472
      %v486 = vlog2.pop %v178
      %v487 = vmul.f32 %v486, 0.6931472
      %v488 = vlog2.pop %v179
      %v489 = vmul.f32 %v488, 0.6931472
      %v490 = vlog2.pop %v180
      %v491 = vmul.f32 %v490, 0.6931472
      %v492 = vlog2.pop %v181
      %v493 = vmul.f32 %v492, 0.6931472
      %v494 = vlog2.pop %v182
      %v495 = vmul.f32 %v494, 0.6931472
      %v496 = vlog2.pop %v183
      %v497 = vmul.f32 %v496, 0.6931472
      %v498 = vlog2.pop %v184
      %v499 = vmul.f32 %v498, 0.6931472
      %v500 = vlog2.pop %v185
      %v501 = vmul.f32 %v500, 0.6931472
      %v502 = vlog2.pop %v186
      %v503 = vmul.f32 %v502, 0.6931472
      %v504 = vlog2.pop %v187
      %v505 = vmul.f32 %v504, 0.6931472
      %v506 = vlog2.pop %v188
      %v507 = vmul.f32 %v506, 0.6931472
      %v508 = vlog2.pop %v189
      %v509 = vmul.f32 %v508, 0.6931472
      %v510 = vlog2.pop %v190
      %v511 = vmul.f32 %v510, 0.6931472
      %v512 = vlog2.pop %v191
      %v513 = vmul.f32 %v512, 0.6931472
      %v514 = vlog2.pop %v192
      %v515 = vmul.f32 %v514, 0.6931472
      %v516 = vlog2.pop %v193
      %v517 = vmul.f32 %v516, 0.6931472
      %v518 = vlog2.pop %v194
      %v519 = vmul.f32 %v518, 0.6931472
      %v520 = vlog2.pop %v195
      %v521 = vmul.f32 %v520, 0.6931472
      %v522 = vlog2.pop %v196
      %v523 = vmul.f32 %v522, 0.6931472
      %v524 = vlog2.pop %v197
      %v525 = vmul.f32 %v524, 0.6931472
      %v526 = vlog2.pop %v198
      %v527 = vmul.f32 %v526, 0.6931472
      %v528 = vlog2.pop %v199
      %v529 = vmul.f32 %v528, 0.6931472
      %v530 = vlog2.pop %v200
      %v531 = vmul.f32 %v530, 0.6931472
      %v532 = vlog2.pop %v201
      %v533 = vmul.f32 %v532, 0.6931472
      %v534 = vlog2.pop %v202
      %v535 = vmul.f32 %v534, 0.6931472
      %v536 = vlog2.pop %v203
      %v537 = vmul.f32 %v536, 0.6931472
      %v538 = vlog2.pop %v204
      %v539 = vmul.f32 %v538, 0.6931472
      %v540 = vlog2.pop %v205
      %v541 = vmul.f32 %v540, 0.6931472
      %v542 = vlog2.pop %v206
      %v543 = vmul.f32 %v542, 0.6931472
      %v544 = vlog2.pop %v207
      %v545 = vmul.f32 %v544, 0.6931472
      %v546 = vlog2.pop %v208
      %v547 = vmul.f32 %v546, 0.6931472
      %v548 = vlog2.pop %v209
      %v549 = vmul.f32 %v548, 0.6931472
      %v550 = vlog2.pop %v210
      %v551 = vmul.f32 %v550, 0.6931472
      %v552 = vlog2.pop %v211
      %v553 = vmul.f32 %v552, 0.6931472
      %v554 = vlog2.pop %v212
      %v555 = vmul.f32 %v554, 0.6931472
      %v556 = vlog2.pop %v213
      %v557 = vmul.f32 %v556, 0.6931472
      %v558 = vlog2.pop %v214
      %v559 = vmul.f32 %v558, 0.6931472
      %v560 = vlog2.pop %v215
      %v561 = vmul.f32 %v560, 0.6931472
      %v562 = vlog2.pop %v216
      %v563 = vmul.f32 %v562, 0.6931472
      %v564 = vlog2.pop %v217
      %v565 = vmul.f32 %v564, 0.6931472
      %v566 = vlog2.pop %v218
      %v567 = vmul.f32 %v566, 0.6931472
      %v568 = vlog2.pop %v219
      %v569 = vmul.f32 %v568, 0.6931472
      %v570 = vlog2.pop %v220
      %v571 = vmul.f32 %v570, 0.6931472
      %v572 = vlog2.pop %v221
      %v573 = vmul.f32 %v572, 0.6931472
      %v574 = vlog2.pop %v222
      %v575 = vmul.f32 %v574, 0.6931472
      %v576 = vlog2.pop %v223
      %v577 = vmul.f32 %v576, 0.6931472
      %v578 = vlog2.pop %v224
      %v579 = vmul.f32 %v578, 0.6931472
      %v580 = vlog2.pop %v225
      %v581 = vmul.f32 %v580, 0.6931472
      %v582 = vlog2.pop %v226
      %v583 = vmul.f32 %v582, 0.6931472
      %v584 = vlog2.pop %v227
      %v585 = vmul.f32 %v584, 0.6931472
      %v586 = vlog2.pop %v228
      %v587 = vmul.f32 %v586, 0.6931472
      %v588 = vlog2.pop %v229
      %v589 = vmul.f32 %v588, 0.6931472
      %v590 = vlog2.pop %v230
      %v591 = vmul.f32 %v590, 0.6931472
      %v592 = vlog2.pop %v231
      %v593 = vmul.f32 %v592, 0.6931472
      %v594 = vlog2.pop %v232
      %v595 = vmul.f32 %v594, 0.6931472
      %v596 = vlog2.pop %v233
      %v597 = vmul.f32 %v596, 0.6931472
      %v598 = vlog2.pop %v234
      %v599 = vmul.f32 %v598, 0.6931472
      %v600 = vlog2.pop %v235
      %v601 = vmul.f32 %v600, 0.6931472
      %v602 = vlog2.pop %v236
      %v603 = vmul.f32 %v602, 0.6931472
      %v604 = vlog2.pop %v237
      %v605 = vmul.f32 %v604, 0.6931472
      %v606 = vlog2.pop %v238
      %v607 = vmul.f32 %v606, 0.6931472
      %v608 = vlog2.pop %v239
      %v609 = vmul.f32 %v608, 0.6931472
      %v610 = vlog2.pop %v240
      %v611 = vmul.f32 %v610, 0.6931472
      %v612 = vlog2.pop %v241
      %v613 = vmul.f32 %v612, 0.6931472
      %v614 = vlog2.pop %v242
      %v615 = vmul.f32 %v614, 0.6931472
      %v616 = vlog2.pop %v243
      %v617 = vmul.f32 %v616, 0.6931472
      %v618 = vlog2.pop %v244
      %v619 = vmul.f32 %v618, 0.6931472
      %v620 = vlog2.pop %v245
      %v621 = vmul.f32 %v620, 0.6931472
      %v622 = vlog2.pop %v246
      %v623 = vmul.f32 %v622, 0.6931472
      %v624 = vlog2.pop %v247
      %v625 = vmul.f32 %v624, 0.6931472
      %v626 = vlog2.pop %v248
      %v627 = vmul.f32 %v626, 0.6931472
      %v628 = vlog2.pop %v249
      %v629 = vmul.f32 %v628, 0.6931472
      %v630 = vlog2.pop %v250
      %v631 = vmul.f32 %v630, 0.6931472
      %v632 = vlog2.pop %v251
      %v633 = vmul.f32 %v632, 0.6931472
      %v634 = vlog2.pop %v252
      %v635 = vmul.f32 %v634, 0.6931472
      %v636 = vlog2.pop %v253
      %v637 = vmul.f32 %v636, 0.6931472
      %v638 = vlog2.pop %v254
      %v639 = vmul.f32 %v638, 0.6931472
      %v640 = vlog2.pop %v255
      %v641 = vmul.f32 %v640, 0.6931472
      %v642 = vlog2.pop %v256
      %v643 = vmul.f32 %v642, 0.6931472
      %v644 = vlog2.pop %v257
      %v645 = vmul.f32 %v644, 0.6931472
      %v646 = vlog2.pop %v258
      %v647 = vmul.f32 %v646, 0.6931472
      %v648 = vlog2.pop %v259
      %v649 = vmul.f32 %v648, 0.6931472
      %v650 = vlog2.pop %v260
      %v651 = vmul.f32 %v650, 0.6931472
      %v652 = vlog2.pop %v261
      %v653 = vmul.f32 %v652, 0.6931472
      %v654 = vlog2.pop %v262
      %v655 = vmul.f32 %v654, 0.6931472
      %v656 = vlog2.pop %v263
      %v657 = vmul.f32 %v656, 0.6931472
      %v658 = vlog2.pop %v264
      %v659 = vmul.f32 %v658, 0.6931472
      %v660 = vlog2.pop %v265
      %v661 = vmul.f32 %v660, 0.6931472
      %v662 = vlog2.pop %v266
      %v663 = vmul.f32 %v662, 0.6931472
      %v664 = vlog2.pop %v267
      %v665 = vmul.f32 %v664, 0.6931472
      %v666 = vlog2.pop %v268
      %v667 = vmul.f32 %v666, 0.6931472
      %v668 = vlog2.pop %v269
      %v669 = vmul.f32 %v668, 0.6931472
      %v670 = vlog2.pop %v270
      %v671 = vmul.f32 %v670, 0.6931472
      %v672 = vlog2.pop %v271
      %v673 = vmul.f32 %v672, 0.6931472
      %v674 = vlog2.pop %v272
      %v675 = vmul.f32 %v674, 0.6931472
      %v676 = vlog2.pop %v273
      %v677 = vmul.f32 %v676, 0.6931472
      %v678 = vlog2.pop %v274
      %v679 = vmul.f32 %v678, 0.6931472
      %v680 = vlog2.pop %v275
      %v681 = vmul.f32 %v680, 0.6931472
      %v682 = vlog2.pop %v276
      %v683 = vmul.f32 %v682, 0.6931472
      %v684 = vlog2.pop %v277
      %v685 = vmul.f32 %v684, 0.6931472
      %v686 = vlog2.pop %v278
      %v687 = vmul.f32 %v686, 0.6931472
      %v688 = vlog2.pop %v279
      %v689 = vmul.f32 %v688, 0.6931472
      %v690 = vlog2.pop %v280
      %v691 = vmul.f32 %v690, 0.6931472
      %v692 = vlog2.pop %v281
      %v693 = vmul.f32 %v692, 0.6931472
      %v694 = vlog2.pop %v282
      %v695 = vmul.f32 %v694, 0.6931472
      %v696 = vlog2.pop %v283
      %v697 = vmul.f32 %v696, 0.6931472
      %v698 = vlog2.pop %v284
      %v699 = vmul.f32 %v698, 0.6931472
      %v700 = vlog2.pop %v285
      %v701 = vmul.f32 %v700, 0.6931472
      %v702 = vlog2.pop %v286
      %v703 = vmul.f32 %v702, 0.6931472
      %v704 = vlog2.pop %v287
      %v705 = vmul.f32 %v704, 0.6931472
      %v706 = vlog2.pop %v288
      %v707 = vmul.f32 %v706, 0.6931472
      %v708 = vlog2.pop %v289
      %v709 = vmul.f32 %v708, 0.6931472
      %v710 = vlog2.pop %v290
      %v711 = vmul.f32 %v710, 0.6931472
      %v712 = vlog2.pop %v291
      %v713 = vmul.f32 %v712, 0.6931472
      %v714 = vlog2.pop %v292
      %v715 = vmul.f32 %v714, 0.6931472
      %v716 = vlog2.pop %v293
      %v717 = vmul.f32 %v716, 0.6931472
      %v718 = vlog2.pop %v294
      %v719 = vmul.f32 %v718, 0.6931472
      %v720 = vlog2.pop %v295
      %v721 = vmul.f32 %v720, 0.6931472
      %v722 = vlog2.pop %v296
      %v723 = vmul.f32 %v722, 0.6931472
      %v724 = vlog2.pop %v297
      %v725 = vmul.f32 %v724, 0.6931472
      %v726 = vlog2.pop %v298
      %v727 = vmul.f32 %v726, 0.6931472
      %v728 = vlog2.pop %v299
      %v729 = vmul.f32 %v728, 0.6931472
      %v730 = vlog2.pop %v300
      %v731 = vmul.f32 %v730, 0.6931472
      %v732 = vlog2.pop %v301
      %v733 = vmul.f32 %v732, 0.6931472
      %v734 = vlog2.pop %v302
      %v735 = vmul.f32 %v734, 0.6931472
      %v736 = vlog2.pop %v303
      %v737 = vmul.f32 %v736, 0.6931472
      %v738 = vlog2.pop %v304
      %v739 = vmul.f32 %v738, 0.6931472
      %v740 = vlog2.pop %v305
      %v741 = vmul.f32 %v740, 0.6931472
      %v742 = vlog2.pop %v306
      %v743 = vmul.f32 %v742, 0.6931472
      %v744 = vlog2.pop %v307
      %v745 = vmul.f32 %v744, 0.6931472
      %v746 = vlog2.pop %v308
      %v747 = vmul.f32 %v746, 0.6931472
      %v748 = vlog2.pop %v309
      %v749 = vmul.f32 %v748, 0.6931472
      %v750 = vlog2.pop %v310
      %v751 = vmul.f32 %v750, 0.6931472
      %v752 = vlog2.pop %v311
      %v753 = vmul.f32 %v752, 0.6931472
      %v754 = vlog2.pop %v312
      %v755 = vmul.f32 %v754, 0.6931472
      %v756 = vlog2.pop %v313
      %v757 = vmul.f32 %v756, 0.6931472
      %v758 = vlog2.pop %v314
      %v759 = vmul.f32 %v758, 0.6931472
      %v760 = vlog2.pop %v315
      %v761 = vmul.f32 %v760, 0.6931472
      %v762 = vlog2.pop %v316
      %v763 = vmul.f32 %v762, 0.6931472
      %v764 = vlog2.pop %v317
      %v765 = vmul.f32 %v764, 0.6931472
      %v766 = vlog2.pop %v318
      %v767 = vmul.f32 %v766, 0.6931472
      %v768 = vlog2.pop %v319
      %v769 = vmul.f32 %v768, 0.6931472
      %v770 = vlog2.pop %v320
      %v771 = vmul.f32 %v770, 0.6931472
      %v772 = vlog2.pop %v321
      %v773 = vmul.f32 %v772, 0.6931472
      %v774 = vlog2.pop %v322
      %v775 = vmul.f32 %v774, 0.6931472
      %v776 = vlog2.pop %v323
      %v777 = vmul.f32 %v776, 0.6931472
      %v778 = vlog2.pop %v324
      %v779 = vmul.f32 %v778, 0.6931472
      %v780 = vlog2.pop %v325
      %v781 = vmul.f32 %v780, 0.6931472
      %v782 = vsub.f32 %v327, %v555
      %v783 = vsub.f32 %v329, %v557
      %v784 = vsub.f32 %v331, %v559
      %v785 = vsub.f32 %v333, %v561
      %v786 = vsub.f32 %v335, %v563
      %v787 = vsub.f32 %v337, %v565
      %v788 = vsub.f32 %v339, %v567
      %v789 = vsub.f32 %v341, %v569
      %v790 = vsub.f32 %v343, %v571
      %v791 = vsub.f32 %v345, %v573
      %v792 = vsub.f32 %v347, %v575
      %v793 = vsub.f32 %v349, %v577
      %v794 = vsub.f32 %v351, %v579
      %v795 = vsub.f32 %v353, %v581
      %v796 = vsub.f32 %v355, %v583
      %v797 = vsub.f32 %v357, %v585
      %v798 = vsub.f32 %v359, %v587
      %v799 = vsub.f32 %v361, %v589
      %v800 = vsub.f32 %v363, %v591
      %v801 = vsub.f32 %v365, %v593
      %v802 = vsub.f32 %v367, %v595
      %v803 = vsub.f32 %v369, %v597
      %v804 = vsub.f32 %v371, %v599
      %v805 = vsub.f32 %v373, %v601
      %v806 = vsub.f32 %v375, %v603
      %v807 = vsub.f32 %v377, %v605
      %v808 = vsub.f32 %v379, %v607
      %v809 = vsub.f32 %v381, %v609
      %v810 = vsub.f32 %v383, %v611
      %v811 = vsub.f32 %v385, %v613
      %v812 = vsub.f32 %v387, %v615
      %v813 = vsub.f32 %v389, %v617
      %v814 = vsub.f32 %v391, %v619
      %v815 = vsub.f32 %v393, %v621
      %v816 = vsub.f32 %v395, %v623
      %v817 = vsub.f32 %v397, %v625
      %v818 = vsub.f32 %v399, %v627
      %v819 = vsub.f32 %v401, %v629
      %v820 = vsub.f32 %v403, %v631
      %v821 = vsub.f32 %v405, %v633
      %v822 = vsub.f32 %v407, %v635
      %v823 = vsub.f32 %v409, %v637
      %v824 = vsub.f32 %v411, %v639
      %v825 = vsub.f32 %v413, %v641
      %v826 = vsub.f32 %v415, %v643
      %v827 = vsub.f32 %v417, %v645
      %v828 = vsub.f32 %v419, %v647
      %v829 = vsub.f32 %v421, %v649
      %v830 = vsub.f32 %v423, %v651
      %v831 = vsub.f32 %v425, %v653
      %v832 = vsub.f32 %v427, %v655
      %v833 = vsub.f32 %v429, %v657
      %v834 = vsub.f32 %v431, %v659
      %v835 = vsub.f32 %v433, %v661
      %v836 = vsub.f32 %v435, %v663
      %v837 = vsub.f32 %v437, %v665
      %v838 = vsub.f32 %v439, %v667
      %v839 = vsub.f32 %v441, %v669
      %v840 = vsub.f32 %v443, %v671
      %v841 = vsub.f32 %v445, %v673
      %v842 = vsub.f32 %v447, %v675
      %v843 = vsub.f32 %v449, %v677
      %v844 = vsub.f32 %v451, %v679
      %v845 = vsub.f32 %v453, %v681
      %v846 = vsub.f32 %v455, %v683
      %v847 = vsub.f32 %v457, %v685
      %v848 = vsub.f32 %v459, %v687
      %v849 = vsub.f32 %v461, %v689
      %v850 = vsub.f32 %v463, %v691
      %v851 = vsub.f32 %v465, %v693
      %v852 = vsub.f32 %v467, %v695
      %v853 = vsub.f32 %v469, %v697
      %v854 = vsub.f32 %v471, %v699
      %v855 = vsub.f32 %v473, %v701
      %v856 = vsub.f32 %v475, %v703
      %v857 = vsub.f32 %v477, %v705
      %v858 = vsub.f32 %v479, %v707
      %v859 = vsub.f32 %v481, %v709
      %v860 = vsub.f32 %v483, %v711
      %v861 = vsub.f32 %v485, %v713
      %v862 = vsub.f32 %v487, %v715
      %v863 = vsub.f32 %v489, %v717
      %v864 = vsub.f32 %v491, %v719
      %v865 = vsub.f32 %v493, %v721
      %v866 = vsub.f32 %v495, %v723
      %v867 = vsub.f32 %v497, %v725
      %v868 = vsub.f32 %v499, %v727
      %v869 = vsub.f32 %v501, %v729
      %v870 = vsub.f32 %v503, %v731
      %v871 = vsub.f32 %v505, %v733
      %v872 = vsub.f32 %v507, %v735
      %v873 = vsub.f32 %v509, %v737
      %v874 = vsub.f32 %v511, %v739
      %v875 = vsub.f32 %v513, %v741
      %v876 = vsub.f32 %v515, %v743
      %v877 = vsub.f32 %v517, %v745
      %v878 = vsub.f32 %v519, %v747
      %v879 = vsub.f32 %v521, %v749
      %v880 = vsub.f32 %v523, %v751
      %v881 = vsub.f32 %v525, %v753
      %v882 = vsub.f32 %v527, %v755
      %v883 = vsub.f32 %v529, %v757
      %v884 = vsub.f32 %v531, %v759
      %v885 = vsub.f32 %v533, %v761
      %v886 = vsub.f32 %v535, %v763
      %v887 = vsub.f32 %v537, %v765
      %v888 = vsub.f32 %v539, %v767
      %v889 = vsub.f32 %v541, %v769
      %v890 = vsub.f32 %v543, %v771
      %v891 = vsub.f32 %v545, %v773
      %v892 = vsub.f32 %v547, %v775
      %v893 = vsub.f32 %v549, %v777
      %v894 = vsub.f32 %v551, %v779
      %v895 = vsub.f32 %v553, %v781
      %v896 = vmul.f32 %v782, %v782
      %v897 = vmul.f32 %v783, %v783
      %v898 = vmul.f32 %v784, %v784
      %v899 = vmul.f32 %v785, %v785
      %v900 = vmul.f32 %v786, %v786
      %v901 = vmul.f32 %v787, %v787
      %v902 = vmul.f32 %v788, %v788
      %v903 = vmul.f32 %v789, %v789
      %v904 = vmul.f32 %v790, %v790
      %v905 = vmul.f32 %v791, %v791
      %v906 = vmul.f32 %v792, %v792
      %v907 = vmul.f32 %v793, %v793
      %v908 = vmul.f32 %v794, %v794
      %v909 = vmul.f32 %v795, %v795
      %v910 = vmul.f32 %v796, %v796
      %v911 = vmul.f32 %v797, %v797
      %v912 = vmul.f32 %v798, %v798
      %v913 = vmul.f32 %v799, %v799
      %v914 = vmul.f32 %v800, %v800
      %v915 = vmul.f32 %v801, %v801
      %v916 = vmul.f32 %v802, %v802
      %v917 = vmul.f32 %v803, %v803
      %v918 = vmul.f32 %v804, %v804
      %v919 = vmul.f32 %v805, %v805
      %v920 = vmul.f32 %v806, %v806
      %v921 = vmul.f32 %v807, %v807
      %v922 = vmul.f32 %v808, %v808
      %v923 = vmul.f32 %v809, %v809
      %v924 = vmul.f32 %v810, %v810
      %v925 = vmul.f32 %v811, %v811
      %v926 = vmul.f32 %v812, %v812
      %v927 = vmul.f32 %v813, %v813
      %v928 = vmul.f32 %v814, %v814
      %v929 = vmul.f32 %v815, %v815
      %v930 = vmul.f32 %v816, %v816
      %v931 = vmul.f32 %v817, %v817
      %v932 = vmul.f32 %v818, %v818
      %v933 = vmul.f32 %v819, %v819
      %v934 = vmul.f32 %v820, %v820
      %v935 = vmul.f32 %v821, %v821
      %v936 = vmul.f32 %v822, %v822
      %v937 = vmul.f32 %v823, %v823
      %v938 = vmul.f32 %v824, %v824
      %v939 = vmul.f32 %v825, %v825
      %v940 = vmul.f32 %v826, %v826
      %v941 = vmul.f32 %v827, %v827
      %v942 = vmul.f32 %v828, %v828
      %v943 = vmul.f32 %v829, %v829
      %v944 = vmul.f32 %v830, %v830
      %v945 = vmul.f32 %v831, %v831
      %v946 = vmul.f32 %v832, %v832
      %v947 = vmul.f32 %v833, %v833
      %v948 = vmul.f32 %v834, %v834
      %v949 = vmul.f32 %v835, %v835
      %v950 = vmul.f32 %v836, %v836
      %v951 = vmul.f32 %v837, %v837
      %v952 = vmul.f32 %v838, %v838
      %v953 = vmul.f32 %v839, %v839
      %v954 = vmul.f32 %v840, %v840
      %v955 = vmul.f32 %v841, %v841
      %v956 = vmul.f32 %v842, %v842
      %v957 = vmul.f32 %v843, %v843
      %v958 = vmul.f32 %v844, %v844
      %v959 = vmul.f32 %v845, %v845
      %v960 = vmul.f32 %v846, %v846
      %v961 = vmul.f32 %v847, %v847
      %v962 = vmul.f32 %v848, %v848
      %v963 = vmul.f32 %v849, %v849
      %v964 = vmul.f32 %v850, %v850
      %v965 = vmul.f32 %v851, %v851
      %v966 = vmul.f32 %v852, %v852
      %v967 = vmul.f32 %v853, %v853
      %v968 = vmul.f32 %v854, %v854
      %v969 = vmul.f32 %v855, %v855
      %v970 = vmul.f32 %v856, %v856
      %v971 = vmul.f32 %v857, %v857
      %v972 = vmul.f32 %v858, %v858
      %v973 = vmul.f32 %v859, %v859
      %v974 = vmul.f32 %v860, %v860
      %v975 = vmul.f32 %v861, %v861
      %v976 = vmul.f32 %v862, %v862
      %v977 = vmul.f32 %v863, %v863
      %v978 = vmul.f32 %v864, %v864
      %v979 = vmul.f32 %v865, %v865
      %v980 = vmul.f32 %v866, %v866
      %v981 = vmul.f32 %v867, %v867
      %v982 = vmul.f32 %v868, %v868
      %v983 = vmul.f32 %v869, %v869
      %v984 = vmul.f32 %v870, %v870
      %v985 = vmul.f32 %v871, %v871
      %v986 = vmul.f32 %v872, %v872
      %v987 = vmul.f32 %v873, %v873
      %v988 = vmul.f32 %v874, %v874
      %v989 = vmul.f32 %v875, %v875
      %v990 = vmul.f32 %v876, %v876
      %v991 = vmul.f32 %v877, %v877
      %v992 = vmul.f32 %v878, %v878
      %v993 = vmul.f32 %v879, %v879
      %v994 = vmul.f32 %v880, %v880
      %v995 = vmul.f32 %v881, %v881
      %v996 = vmul.f32 %v882, %v882
      %v997 = vmul.f32 %v883, %v883
      %v998 = vmul.f32 %v884, %v884
      %v999 = vmul.f32 %v885, %v885
      %v1000 = vmul.f32 %v886, %v886
      %v1001 = vmul.f32 %v887, %v887
      %v1002 = vmul.f32 %v888, %v888
      %v1003 = vmul.f32 %v889, %v889
      %v1004 = vmul.f32 %v890, %v890
      %v1005 = vmul.f32 %v891, %v891
      %v1006 = vmul.f32 %v892, %v892
      %v1007 = vmul.f32 %v893, %v893
      %v1008 = vmul.f32 %v894, %v894
      %v1009 = vmul.f32 %v895, %v895
      %v1010 = vadd.f32 %v896, %v899
      %v1011 = vadd.f32 %v1010, %v902
      %v1012 = vadd.f32 %v1011, %v905
      %v1013 = vadd.f32 %v1012, %v908
      %v1014 = vadd.f32 %v1013, %v911
      %v1015 = vadd.f32 %v1014, %v914
      %v1016 = vadd.f32 %v1015, %v917
      %v1017 = vadd.f32 %v1016, %v920
      %v1018 = vadd.f32 %v1017, %v923
      %v1019 = vadd.f32 %v1018, %v926
      %v1020 = vadd.f32 %v1019, %v929
      %v1021 = vadd.f32 %v1020, %v932
      %v1022 = vadd.f32 %v1021, %v935
      %v1023 = vadd.f32 %v1022, %v938
      %v1024 = vadd.f32 %v1023, %v941
      %v1025 = vadd.f32 %v1024, %v944
      %v1026 = vadd.f32 %v1025, %v947
      %v1027 = vadd.f32 %v1026, %v950
      %v1028 = vadd.f32 %v1027, %v953
      %v1029 = vadd.f32 %v1028, %v956
      %v1030 = vadd.f32 %v1029, %v959
      %v1031 = vadd.f32 %v1030, %v962
      %v1032 = vadd.f32 %v1031, %v965
      %v1033 = vadd.f32 %v1032, %v968
      %v1034 = vadd.f32 %v1033, %v971
      %v1035 = vadd.f32 %v1034, %v974
      %v1036 = vadd.f32 %v1035, %v977
      %v1037 = vadd.f32 %v1036, %v980
      %v1038 = vadd.f32 %v1037, %v983
      %v1039 = vadd.f32 %v1038, %v986
      %v1040 = vadd.f32 %v1039, %v989
      %v1041 = vadd.f32 %v1040, %v992
      %v1042 = vadd.f32 %v1041, %v995
      %v1043 = vadd.f32 %v1042, %v998
      %v1044 = vadd.f32 %v1043, %v1001
      %v1045 = vadd.f32 %v1044, %v1004
      %v1046 = vadd.f32 %v1045, %v1007
      %v1047 = vadd.f32 %v897, %v900
      %v1048 = vadd.f32 %v1047, %v903
      %v1049 = vadd.f32 %v1048, %v906
      %v1050 = vadd.f32 %v1049, %v909
      %v1051 = vadd.f32 %v1050, %v912
      %v1052 = vadd.f32 %v1051, %v915
      %v1053 = vadd.f32 %v1052, %v918
      %v1054 = vadd.f32 %v1053, %v921
      %v1055 = vadd.f32 %v1054, %v924
      %v1056 = vadd.f32 %v1055, %v927
      %v1057 = vadd.f32 %v1056, %v930
      %v1058 = vadd.f32 %v1057, %v933
      %v1059 = vadd.f32 %v1058, %v936
      %v1060 = vadd.f32 %v1059, %v939
      %v1061 = vadd.f32 %v1060, %v942
      %v1062 = vadd.f32 %v1061, %v945
      %v1063 = vadd.f32 %v1062, %v948
      %v1064 = vadd.f32 %v1063, %v951
      %v1065 = vadd.f32 %v1064, %v954
      %v1066 = vadd.f32 %v1065, %v957
      %v1067 = vadd.f32 %v1066, %v960
      %v1068 = vadd.f32 %v1067, %v963
      %v1069 = vadd.f32 %v1068, %v966
      %v1070 = vadd.f32 %v1069, %v969
      %v1071 = vadd.f32 %v1070, %v972
      %v1072 = vadd.f32 %v1071, %v975
      %v1073 = vadd.f32 %v1072, %v978
      %v1074 = vadd.f32 %v1073, %v981
      %v1075 = vadd.f32 %v1074, %v984
      %v1076 = vadd.f32 %v1075, %v987
      %v1077 = vadd.f32 %v1076, %v990
      %v1078 = vadd.f32 %v1077, %v993
      %v1079 = vadd.f32 %v1078, %v996
      %v1080 = vadd.f32 %v1079, %v999
      %v1081 = vadd.f32 %v1080, %v1002
      %v1082 = vadd.f32 %v1081, %v1005
      %v1083 = vadd.f32 %v1082, %v1008
      %vm1084 = vcmask 7168
      %v1085 = vsel %vm1084, %v898, 0.0
      %v1086 = vsel %vm1084, %v901, 0.0
      %v1087 = vadd.f32 %v1085, %v1086
      %v1088 = vsel %vm1084, %v904, 0.0
      %v1089 = vadd.f32 %v1087, %v1088
      %v1090 = vsel %vm1084, %v907, 0.0
      %v1091 = vadd.f32 %v1089, %v1090
      %v1092 = vsel %vm1084, %v910, 0.0
      %v1093 = vadd.f32 %v1091, %v1092
      %v1094 = vsel %vm1084, %v913, 0.0
      %v1095 = vadd.f32 %v1093, %v1094
      %v1096 = vsel %vm1084, %v916, 0.0
      %v1097 = vadd.f32 %v1095, %v1096
      %v1098 = vsel %vm1084, %v919, 0.0
      %v1099 = vadd.f32 %v1097, %v1098
      %v1100 = vsel %vm1084, %v922, 0.0
      %v1101 = vadd.f32 %v1099, %v1100
      %v1102 = vsel %vm1084, %v925, 0.0
      %v1103 = vadd.f32 %v1101, %v1102
      %v1104 = vsel %vm1084, %v928, 0.0
      %v1105 = vadd.f32 %v1103, %v1104
      %v1106 = vsel %vm1084, %v931, 0.0
      %v1107 = vadd.f32 %v1105, %v1106
      %v1108 = vsel %vm1084, %v934, 0.0
      %v1109 = vadd.f32 %v1107, %v1108
      %v1110 = vsel %vm1084, %v937, 0.0
      %v1111 = vadd.f32 %v1109, %v1110
      %v1112 = vsel %vm1084, %v940, 0.0
      %v1113 = vadd.f32 %v1111, %v1112
      %v1114 = vsel %vm1084, %v943, 0.0
      %v1115 = vadd.f32 %v1113, %v1114
      %v1116 = vsel %vm1084, %v946, 0.0
      %v1117 = vadd.f32 %v1115, %v1116
      %v1118 = vsel %vm1084, %v949, 0.0
      %v1119 = vadd.f32 %v1117, %v1118
      %v1120 = vsel %vm1084, %v952, 0.0
      %v1121 = vadd.f32 %v1119, %v1120
      %v1122 = vsel %vm1084, %v955, 0.0
      %v1123 = vadd.f32 %v1121, %v1122
      %v1124 = vsel %vm1084, %v958, 0.0
      %v1125 = vadd.f32 %v1123, %v1124
      %v1126 = vsel %vm1084, %v961, 0.0
      %v1127 = vadd.f32 %v1125, %v1126
      %v1128 = vsel %vm1084, %v964, 0.0
      %v1129 = vadd.f32 %v1127, %v1128
      %v1130 = vsel %vm1084, %v967, 0.0
      %v1131 = vadd.f32 %v1129, %v1130
      %v1132 = vsel %vm1084, %v970, 0.0
      %v1133 = vadd.f32 %v1131, %v1132
      %v1134 = vsel %vm1084, %v973, 0.0
      %v1135 = vadd.f32 %v1133, %v1134
      %v1136 = vsel %vm1084, %v976, 0.0
      %v1137 = vadd.f32 %v1135, %v1136
      %v1138 = vsel %vm1084, %v979, 0.0
      %v1139 = vadd.f32 %v1137, %v1138
      %v1140 = vsel %vm1084, %v982, 0.0
      %v1141 = vadd.f32 %v1139, %v1140
      %v1142 = vsel %vm1084, %v985, 0.0
      %v1143 = vadd.f32 %v1141, %v1142
      %v1144 = vsel %vm1084, %v988, 0.0
      %v1145 = vadd.f32 %v1143, %v1144
      %v1146 = vsel %vm1084, %v991, 0.0
      %v1147 = vadd.f32 %v1145, %v1146
      %v1148 = vsel %vm1084, %v994, 0.0
      %v1149 = vadd.f32 %v1147, %v1148
      %v1150 = vsel %vm1084, %v997, 0.0
      %v1151 = vadd.f32 %v1149, %v1150
      %v1152 = vsel %vm1084, %v1000, 0.0
      %v1153 = vadd.f32 %v1151, %v1152
      %v1154 = vsel %vm1084, %v1003, 0.0
      %v1155 = vadd.f32 %v1153, %v1154
      %v1156 = vsel %vm1084, %v1006, 0.0
      %v1157 = vadd.f32 %v1155, %v1156
      %v1158 = vsel %vm1084, %v1009, 0.0
      %v1159 = vadd.f32 %v1157, %v1158
      %v1160 = vld [vmem:[#allocation2] sm:$0xff]
      %v1161 = vld [vmem:[#allocation2 + $0x8] sm:$0xff]
      %v1162 = vld [vmem:[#allocation2 + $0x10] sm:$0xff]
      %v1163 = vadd.f32 %v1160, %v1046
      %v1164 = vadd.f32 %v1161, %v1083
      %v1165 = vadd.f32 %v1162, %v1159
      %1166 = vst [vmem:[#allocation2] sm:$0xff] %v1163
      %1167 = vst [vmem:[#allocation2 + $0x8] sm:$0xff] %v1164
      %1168 = vst.msk [vmem:[#allocation2 + $0x10] sm:$0xff] %vm1084, %v1165
    $region17: #{tpu_custom_call.1} parent=1 // pred_fallthru
      _
    // Predicated region
    $region18: #{tpu_custom_call.1} parent=1 // pred_check
      %p1169 = pneg %p93
    $region19: #{tpu_custom_call.1} parent=1 // pred_check_branch
      %1171 = sbr.rel (%p1169) target = $region21
    $region20: #{tpu_custom_call.1} parent=1 // pred_region
      %v1172 = vlaneseq
      %v1173 = vshrl.u32 %v1172, 7
      %v1174 = vadd.s32 %v1173, 8
      %v1175 = vadd.s32 %v1173, 16
      %v1176 = vadd.s32 %v1173, 24
      %v1177 = vadd.s32 %v1173, 32
      %v1178 = vadd.s32 %v1173, 40
      %v1179 = vadd.s32 %v1173, 48
      %v1180 = vadd.s32 %v1173, 56
      %v1181 = vadd.s32 %v1173, 64
      %v1182 = vadd.s32 %v1173, 72
      %v1183 = vadd.s32 %v1173, 80
      %v1184 = vadd.s32 %v1173, 88
      %v1185 = vadd.s32 %v1173, 96
      %v1186 = vadd.s32 %v1173, 104
      %v1187 = vadd.s32 %v1173, 112
      %v1188 = vadd.s32 %v1173, 120
      %v1189 = vadd.s32 %v1173, 128
      %v1190 = vadd.s32 %v1173, 136
      %v1191 = vadd.s32 %v1173, 144
      %v1192 = vadd.s32 %v1173, 152
      %v1193 = vadd.s32 %v1173, 160
      %v1194 = vadd.s32 %v1173, 168
      %v1195 = vadd.s32 %v1173, 176
      %v1196 = vadd.s32 %v1173, 184
      %v1197 = vadd.s32 %v1173, 192
      %v1198 = vadd.s32 %v1173, 200
      %v1199 = vadd.s32 %v1173, 208
      %v1200 = vadd.s32 %v1173, 216
      %v1201 = vadd.s32 %v1173, 224
      %v1202 = vadd.s32 %v1173, 232
      %v1203 = vadd.s32 %v1173, 240
      %v1204 = vadd.s32 %v1173, 248
      %v1205 = vadd.s32 %v1173, 256
      %v1206 = vadd.s32 %v1173, 264
      %v1207 = vadd.s32 %v1173, 272
      %v1208 = vadd.s32 %v1173, 280
      %v1209 = vadd.s32 %v1173, 288
      %v1210 = vadd.s32 %v1173, 296
      %v1211 = vstv %s91
      %v1212 = vadd.s32 %v1211, %v1173
      %v1213 = vadd.s32 %v1211, %v1174
      %v1214 = vadd.s32 %v1211, %v1175
      %v1215 = vadd.s32 %v1211, %v1176
      %v1216 = vadd.s32 %v1211, %v1177
      %v1217 = vadd.s32 %v1211, %v1178
      %v1218 = vadd.s32 %v1211, %v1179
      %v1219 = vadd.s32 %v1211, %v1180
      %v1220 = vadd.s32 %v1211, %v1181
      %v1221 = vadd.s32 %v1211, %v1182
      %v1222 = vadd.s32 %v1211, %v1183
      %v1223 = vadd.s32 %v1211, %v1184
      %v1224 = vadd.s32 %v1211, %v1185
      %v1225 = vadd.s32 %v1211, %v1186
      %v1226 = vadd.s32 %v1211, %v1187
      %v1227 = vadd.s32 %v1211, %v1188
      %v1228 = vadd.s32 %v1211, %v1189
      %v1229 = vadd.s32 %v1211, %v1190
      %v1230 = vadd.s32 %v1211, %v1191
      %v1231 = vadd.s32 %v1211, %v1192
      %v1232 = vadd.s32 %v1211, %v1193
      %v1233 = vadd.s32 %v1211, %v1194
      %v1234 = vadd.s32 %v1211, %v1195
      %v1235 = vadd.s32 %v1211, %v1196
      %v1236 = vadd.s32 %v1211, %v1197
      %v1237 = vadd.s32 %v1211, %v1198
      %v1238 = vadd.s32 %v1211, %v1199
      %v1239 = vadd.s32 %v1211, %v1200
      %v1240 = vadd.s32 %v1211, %v1201
      %v1241 = vadd.s32 %v1211, %v1202
      %v1242 = vadd.s32 %v1211, %v1203
      %v1243 = vadd.s32 %v1211, %v1204
      %v1244 = vadd.s32 %v1211, %v1205
      %v1245 = vadd.s32 %v1211, %v1206
      %v1246 = vadd.s32 %v1211, %v1207
      %v1247 = vadd.s32 %v1211, %v1208
      %v1248 = vadd.s32 %v1211, %v1209
      %v1249 = vadd.s32 %v1211, %v1210
      %vm1250 = vcmp.lt.s32.totalorder %v1212, 300
      %vm1251 = vcmp.lt.s32.totalorder %v1213, 300
      %vm1252 = vcmp.lt.s32.totalorder %v1214, 300
      %vm1253 = vcmp.lt.s32.totalorder %v1215, 300
      %vm1254 = vcmp.lt.s32.totalorder %v1216, 300
      %vm1255 = vcmp.lt.s32.totalorder %v1217, 300
      %vm1256 = vcmp.lt.s32.totalorder %v1218, 300
      %vm1257 = vcmp.lt.s32.totalorder %v1219, 300
      %vm1258 = vcmp.lt.s32.totalorder %v1220, 300
      %vm1259 = vcmp.lt.s32.totalorder %v1221, 300
      %vm1260 = vcmp.lt.s32.totalorder %v1222, 300
      %vm1261 = vcmp.lt.s32.totalorder %v1223, 300
      %vm1262 = vcmp.lt.s32.totalorder %v1224, 300
      %vm1263 = vcmp.lt.s32.totalorder %v1225, 300
      %vm1264 = vcmp.lt.s32.totalorder %v1226, 300
      %vm1265 = vcmp.lt.s32.totalorder %v1227, 300
      %vm1266 = vcmp.lt.s32.totalorder %v1228, 300
      %vm1267 = vcmp.lt.s32.totalorder %v1229, 300
      %vm1268 = vcmp.lt.s32.totalorder %v1230, 300
      %vm1269 = vcmp.lt.s32.totalorder %v1231, 300
      %vm1270 = vcmp.lt.s32.totalorder %v1232, 300
      %vm1271 = vcmp.lt.s32.totalorder %v1233, 300
      %vm1272 = vcmp.lt.s32.totalorder %v1234, 300
      %vm1273 = vcmp.lt.s32.totalorder %v1235, 300
      %vm1274 = vcmp.lt.s32.totalorder %v1236, 300
      %vm1275 = vcmp.lt.s32.totalorder %v1237, 300
      %vm1276 = vcmp.lt.s32.totalorder %v1238, 300
      %vm1277 = vcmp.lt.s32.totalorder %v1239, 300
      %vm1278 = vcmp.lt.s32.totalorder %v1240, 300
      %vm1279 = vcmp.lt.s32.totalorder %v1241, 300
      %vm1280 = vcmp.lt.s32.totalorder %v1242, 300
      %vm1281 = vcmp.lt.s32.totalorder %v1243, 300
      %vm1282 = vcmp.lt.s32.totalorder %v1244, 300
      %vm1283 = vcmp.lt.s32.totalorder %v1245, 300
      %vm1284 = vcmp.lt.s32.totalorder %v1246, 300
      %vm1285 = vcmp.lt.s32.totalorder %v1247, 300
      %vm1286 = vcmp.lt.s32.totalorder %v1248, 300
      %vm1287 = vcmp.lt.s32.totalorder %v1249, 300
      %v1288 = vld [vmem:[%s64] sm:$0xff]
      %v1289 = vld [vmem:[%s64 + $0x8] sm:$0xff]
      %v1290 = vld [vmem:[%s64 + $0x10] sm:$0xff]
      %v1291 = vld [vmem:[%s64 + $0x18] sm:$0xff]
      %v1292 = vld [vmem:[%s64 + $0x20] sm:$0xff]
      %v1293 = vld [vmem:[%s64 + $0x28] sm:$0xff]
      %v1294 = vld [vmem:[%s64 + $0x30] sm:$0xff]
      %v1295 = vld [vmem:[%s64 + $0x38] sm:$0xff]
      %v1296 = vld [vmem:[%s64 + $0x40] sm:$0xff]
      %v1297 = vld [vmem:[%s64 + $0x48] sm:$0xff]
      %v1298 = vld [vmem:[%s64 + $0x50] sm:$0xff]
      %v1299 = vld [vmem:[%s64 + $0x58] sm:$0xff]
      %v1300 = vld [vmem:[%s64 + $0x60] sm:$0xff]
      %v1301 = vld [vmem:[%s64 + $0x68] sm:$0xff]
      %v1302 = vld [vmem:[%s64 + $0x70] sm:$0xff]
      %v1303 = vld [vmem:[%s64 + $0x78] sm:$0xff]
      %v1304 = vld [vmem:[%s64 + $0x80] sm:$0xff]
      %v1305 = vld [vmem:[%s64 + $0x88] sm:$0xff]
      %v1306 = vld [vmem:[%s64 + $0x90] sm:$0xff]
      %v1307 = vld [vmem:[%s64 + $0x98] sm:$0xff]
      %v1308 = vld [vmem:[%s64 + $0xa0] sm:$0xff]
      %v1309 = vld [vmem:[%s64 + $0xa8] sm:$0xff]
      %v1310 = vld [vmem:[%s64 + $0xb0] sm:$0xff]
      %v1311 = vld [vmem:[%s64 + $0xb8] sm:$0xff]
      %v1312 = vld [vmem:[%s64 + $0xc0] sm:$0xff]
      %v1313 = vld [vmem:[%s64 + $0xc8] sm:$0xff]
      %v1314 = vld [vmem:[%s64 + $0xd0] sm:$0xff]
      %v1315 = vld [vmem:[%s64 + $0xd8] sm:$0xff]
      %v1316 = vld [vmem:[%s64 + $0xe0] sm:$0xff]
      %v1317 = vld [vmem:[%s64 + $0xe8] sm:$0xff]
      %v1318 = vld [vmem:[%s64 + $0xf0] sm:$0xff]
      %v1319 = vld [vmem:[%s64 + $0xf8] sm:$0xff]
      %v1320 = vld [vmem:[%s64 + $0x100] sm:$0xff]
      %v1321 = vld [vmem:[%s64 + $0x108] sm:$0xff]
      %v1322 = vld [vmem:[%s64 + $0x110] sm:$0xff]
      %v1323 = vld [vmem:[%s64 + $0x118] sm:$0xff]
      %v1324 = vld [vmem:[%s64 + $0x120] sm:$0xff]
      %v1325 = vld [vmem:[%s64 + $0x128] sm:$0xff]
      %v1326 = vld [vmem:[%s64 + $0x130] sm:$0xff]
      %v1327 = vld [vmem:[%s64 + $0x138] sm:$0xff]
      %v1328 = vld [vmem:[%s64 + $0x140] sm:$0xff]
      %v1329 = vld [vmem:[%s64 + $0x148] sm:$0xff]
      %v1330 = vld [vmem:[%s64 + $0x150] sm:$0xff]
      %v1331 = vld [vmem:[%s64 + $0x158] sm:$0xff]
      %v1332 = vld [vmem:[%s64 + $0x160] sm:$0xff]
      %v1333 = vld [vmem:[%s64 + $0x168] sm:$0xff]
      %v1334 = vld [vmem:[%s64 + $0x170] sm:$0xff]
      %v1335 = vld [vmem:[%s64 + $0x178] sm:$0xff]
      %v1336 = vld [vmem:[%s64 + $0x180] sm:$0xff]
      %v1337 = vld [vmem:[%s64 + $0x188] sm:$0xff]
      %v1338 = vld [vmem:[%s64 + $0x190] sm:$0xff]
      %v1339 = vld [vmem:[%s64 + $0x198] sm:$0xff]
      %v1340 = vld [vmem:[%s64 + $0x1a0] sm:$0xff]
      %v1341 = vld [vmem:[%s64 + $0x1a8] sm:$0xff]
      %v1342 = vld [vmem:[%s64 + $0x1b0] sm:$0xff]
      %v1343 = vld [vmem:[%s64 + $0x1b8] sm:$0xff]
      %v1344 = vld [vmem:[%s64 + $0x1c0] sm:$0xff]
      %v1345 = vld [vmem:[%s64 + $0x1c8] sm:$0xff]
      %v1346 = vld [vmem:[%s64 + $0x1d0] sm:$0xff]
      %v1347 = vld [vmem:[%s64 + $0x1d8] sm:$0xff]
      %v1348 = vld [vmem:[%s64 + $0x1e0] sm:$0xff]
      %v1349 = vld [vmem:[%s64 + $0x1e8] sm:$0xff]
      %v1350 = vld [vmem:[%s64 + $0x1f0] sm:$0xff]
      %v1351 = vld [vmem:[%s64 + $0x1f8] sm:$0xff]
      %v1352 = vld [vmem:[%s64 + $0x200] sm:$0xff]
      %v1353 = vld [vmem:[%s64 + $0x208] sm:$0xff]
      %v1354 = vld [vmem:[%s64 + $0x210] sm:$0xff]
      %v1355 = vld [vmem:[%s64 + $0x218] sm:$0xff]
      %v1356 = vld [vmem:[%s64 + $0x220] sm:$0xff]
      %v1357 = vld [vmem:[%s64 + $0x228] sm:$0xff]
      %v1358 = vld [vmem:[%s64 + $0x230] sm:$0xff]
      %v1359 = vld [vmem:[%s64 + $0x238] sm:$0xff]
      %v1360 = vld [vmem:[%s64 + $0x240] sm:$0xff]
      %v1361 = vld [vmem:[%s64 + $0x248] sm:$0xff]
      %v1362 = vld [vmem:[%s64 + $0x250] sm:$0xff]
      %v1363 = vld [vmem:[%s64 + $0x258] sm:$0xff]
      %v1364 = vld [vmem:[%s64 + $0x260] sm:$0xff]
      %v1365 = vld [vmem:[%s64 + $0x268] sm:$0xff]
      %v1366 = vld [vmem:[%s64 + $0x270] sm:$0xff]
      %v1367 = vld [vmem:[%s64 + $0x278] sm:$0xff]
      %v1368 = vld [vmem:[%s64 + $0x280] sm:$0xff]
      %v1369 = vld [vmem:[%s64 + $0x288] sm:$0xff]
      %v1370 = vld [vmem:[%s64 + $0x290] sm:$0xff]
      %v1371 = vld [vmem:[%s64 + $0x298] sm:$0xff]
      %v1372 = vld [vmem:[%s64 + $0x2a0] sm:$0xff]
      %v1373 = vld [vmem:[%s64 + $0x2a8] sm:$0xff]
      %v1374 = vld [vmem:[%s64 + $0x2b0] sm:$0xff]
      %v1375 = vld [vmem:[%s64 + $0x2b8] sm:$0xff]
      %v1376 = vld [vmem:[%s64 + $0x2c0] sm:$0xff]
      %v1377 = vld [vmem:[%s64 + $0x2c8] sm:$0xff]
      %v1378 = vld [vmem:[%s64 + $0x2d0] sm:$0xff]
      %v1379 = vld [vmem:[%s64 + $0x2d8] sm:$0xff]
      %v1380 = vld [vmem:[%s64 + $0x2e0] sm:$0xff]
      %v1381 = vld [vmem:[%s64 + $0x2e8] sm:$0xff]
      %v1382 = vld [vmem:[%s64 + $0x2f0] sm:$0xff]
      %v1383 = vld [vmem:[%s64 + $0x2f8] sm:$0xff]
      %v1384 = vld [vmem:[%s64 + $0x300] sm:$0xff]
      %v1385 = vld [vmem:[%s64 + $0x308] sm:$0xff]
      %v1386 = vld [vmem:[%s64 + $0x310] sm:$0xff]
      %v1387 = vld [vmem:[%s64 + $0x318] sm:$0xff]
      %v1388 = vld [vmem:[%s64 + $0x320] sm:$0xff]
      %v1389 = vld [vmem:[%s64 + $0x328] sm:$0xff]
      %v1390 = vld [vmem:[%s64 + $0x330] sm:$0xff]
      %v1391 = vld [vmem:[%s64 + $0x338] sm:$0xff]
      %v1392 = vld [vmem:[%s64 + $0x340] sm:$0xff]
      %v1393 = vld [vmem:[%s64 + $0x348] sm:$0xff]
      %v1394 = vld [vmem:[%s64 + $0x350] sm:$0xff]
      %v1395 = vld [vmem:[%s64 + $0x358] sm:$0xff]
      %v1396 = vld [vmem:[%s64 + $0x360] sm:$0xff]
      %v1397 = vld [vmem:[%s64 + $0x368] sm:$0xff]
      %v1398 = vld [vmem:[%s64 + $0x370] sm:$0xff]
      %v1399 = vld [vmem:[%s64 + $0x378] sm:$0xff]
      %v1400 = vld [vmem:[%s64 + $0x380] sm:$0xff]
      %v1401 = vld [vmem:[%s64 + $0x388] sm:$0xff]
      %v1402 = vld [vmem:[%s77] sm:$0xff]
      %v1403 = vld [vmem:[%s77 + $0x8] sm:$0xff]
      %v1404 = vld [vmem:[%s77 + $0x10] sm:$0xff]
      %v1405 = vld [vmem:[%s77 + $0x18] sm:$0xff]
      %v1406 = vld [vmem:[%s77 + $0x20] sm:$0xff]
      %v1407 = vld [vmem:[%s77 + $0x28] sm:$0xff]
      %v1408 = vld [vmem:[%s77 + $0x30] sm:$0xff]
      %v1409 = vld [vmem:[%s77 + $0x38] sm:$0xff]
      %v1410 = vld [vmem:[%s77 + $0x40] sm:$0xff]
      %v1411 = vld [vmem:[%s77 + $0x48] sm:$0xff]
      %v1412 = vld [vmem:[%s77 + $0x50] sm:$0xff]
      %v1413 = vld [vmem:[%s77 + $0x58] sm:$0xff]
      %v1414 = vld [vmem:[%s77 + $0x60] sm:$0xff]
      %v1415 = vld [vmem:[%s77 + $0x68] sm:$0xff]
      %v1416 = vld [vmem:[%s77 + $0x70] sm:$0xff]
      %v1417 = vld [vmem:[%s77 + $0x78] sm:$0xff]
      %v1418 = vld [vmem:[%s77 + $0x80] sm:$0xff]
      %v1419 = vld [vmem:[%s77 + $0x88] sm:$0xff]
      %v1420 = vld [vmem:[%s77 + $0x90] sm:$0xff]
      %v1421 = vld [vmem:[%s77 + $0x98] sm:$0xff]
      %v1422 = vld [vmem:[%s77 + $0xa0] sm:$0xff]
      %v1423 = vld [vmem:[%s77 + $0xa8] sm:$0xff]
      %v1424 = vld [vmem:[%s77 + $0xb0] sm:$0xff]
      %v1425 = vld [vmem:[%s77 + $0xb8] sm:$0xff]
      %v1426 = vld [vmem:[%s77 + $0xc0] sm:$0xff]
      %v1427 = vld [vmem:[%s77 + $0xc8] sm:$0xff]
      %v1428 = vld [vmem:[%s77 + $0xd0] sm:$0xff]
      %v1429 = vld [vmem:[%s77 + $0xd8] sm:$0xff]
      %v1430 = vld [vmem:[%s77 + $0xe0] sm:$0xff]
      %v1431 = vld [vmem:[%s77 + $0xe8] sm:$0xff]
      %v1432 = vld [vmem:[%s77 + $0xf0] sm:$0xff]
      %v1433 = vld [vmem:[%s77 + $0xf8] sm:$0xff]
      %v1434 = vld [vmem:[%s77 + $0x100] sm:$0xff]
      %v1435 = vld [vmem:[%s77 + $0x108] sm:$0xff]
      %v1436 = vld [vmem:[%s77 + $0x110] sm:$0xff]
      %v1437 = vld [vmem:[%s77 + $0x118] sm:$0xff]
      %v1438 = vld [vmem:[%s77 + $0x120] sm:$0xff]
      %v1439 = vld [vmem:[%s77 + $0x128] sm:$0xff]
      %v1440 = vld [vmem:[%s77 + $0x130] sm:$0xff]
      %v1441 = vld [vmem:[%s77 + $0x138] sm:$0xff]
      %v1442 = vld [vmem:[%s77 + $0x140] sm:$0xff]
      %v1443 = vld [vmem:[%s77 + $0x148] sm:$0xff]
      %v1444 = vld [vmem:[%s77 + $0x150] sm:$0xff]
      %v1445 = vld [vmem:[%s77 + $0x158] sm:$0xff]
      %v1446 = vld [vmem:[%s77 + $0x160] sm:$0xff]
      %v1447 = vld [vmem:[%s77 + $0x168] sm:$0xff]
      %v1448 = vld [vmem:[%s77 + $0x170] sm:$0xff]
      %v1449 = vld [vmem:[%s77 + $0x178] sm:$0xff]
      %v1450 = vld [vmem:[%s77 + $0x180] sm:$0xff]
      %v1451 = vld [vmem:[%s77 + $0x188] sm:$0xff]
      %v1452 = vld [vmem:[%s77 + $0x190] sm:$0xff]
      %v1453 = vld [vmem:[%s77 + $0x198] sm:$0xff]
      %v1454 = vld [vmem:[%s77 + $0x1a0] sm:$0xff]
      %v1455 = vld [vmem:[%s77 + $0x1a8] sm:$0xff]
      %v1456 = vld [vmem:[%s77 + $0x1b0] sm:$0xff]
      %v1457 = vld [vmem:[%s77 + $0x1b8] sm:$0xff]
      %v1458 = vld [vmem:[%s77 + $0x1c0] sm:$0xff]
      %v1459 = vld [vmem:[%s77 + $0x1c8] sm:$0xff]
      %v1460 = vld [vmem:[%s77 + $0x1d0] sm:$0xff]
      %v1461 = vld [vmem:[%s77 + $0x1d8] sm:$0xff]
      %v1462 = vld [vmem:[%s77 + $0x1e0] sm:$0xff]
      %v1463 = vld [vmem:[%s77 + $0x1e8] sm:$0xff]
      %v1464 = vld [vmem:[%s77 + $0x1f0] sm:$0xff]
      %v1465 = vld [vmem:[%s77 + $0x1f8] sm:$0xff]
      %v1466 = vld [vmem:[%s77 + $0x200] sm:$0xff]
      %v1467 = vld [vmem:[%s77 + $0x208] sm:$0xff]
      %v1468 = vld [vmem:[%s77 + $0x210] sm:$0xff]
      %v1469 = vld [vmem:[%s77 + $0x218] sm:$0xff]
      %v1470 = vld [vmem:[%s77 + $0x220] sm:$0xff]
      %v1471 = vld [vmem:[%s77 + $0x228] sm:$0xff]
      %v1472 = vld [vmem:[%s77 + $0x230] sm:$0xff]
      %v1473 = vld [vmem:[%s77 + $0x238] sm:$0xff]
      %v1474 = vld [vmem:[%s77 + $0x240] sm:$0xff]
      %v1475 = vld [vmem:[%s77 + $0x248] sm:$0xff]
      %v1476 = vld [vmem:[%s77 + $0x250] sm:$0xff]
      %v1477 = vld [vmem:[%s77 + $0x258] sm:$0xff]
      %v1478 = vld [vmem:[%s77 + $0x260] sm:$0xff]
      %v1479 = vld [vmem:[%s77 + $0x268] sm:$0xff]
      %v1480 = vld [vmem:[%s77 + $0x270] sm:$0xff]
      %v1481 = vld [vmem:[%s77 + $0x278] sm:$0xff]
      %v1482 = vld [vmem:[%s77 + $0x280] sm:$0xff]
      %v1483 = vld [vmem:[%s77 + $0x288] sm:$0xff]
      %v1484 = vld [vmem:[%s77 + $0x290] sm:$0xff]
      %v1485 = vld [vmem:[%s77 + $0x298] sm:$0xff]
      %v1486 = vld [vmem:[%s77 + $0x2a0] sm:$0xff]
      %v1487 = vld [vmem:[%s77 + $0x2a8] sm:$0xff]
      %v1488 = vld [vmem:[%s77 + $0x2b0] sm:$0xff]
      %v1489 = vld [vmem:[%s77 + $0x2b8] sm:$0xff]
      %v1490 = vld [vmem:[%s77 + $0x2c0] sm:$0xff]
      %v1491 = vld [vmem:[%s77 + $0x2c8] sm:$0xff]
      %v1492 = vld [vmem:[%s77 + $0x2d0] sm:$0xff]
      %v1493 = vld [vmem:[%s77 + $0x2d8] sm:$0xff]
      %v1494 = vld [vmem:[%s77 + $0x2e0] sm:$0xff]
      %v1495 = vld [vmem:[%s77 + $0x2e8] sm:$0xff]
      %v1496 = vld [vmem:[%s77 + $0x2f0] sm:$0xff]
      %v1497 = vld [vmem:[%s77 + $0x2f8] sm:$0xff]
      %v1498 = vld [vmem:[%s77 + $0x300] sm:$0xff]
      %v1499 = vld [vmem:[%s77 + $0x308] sm:$0xff]
      %v1500 = vld [vmem:[%s77 + $0x310] sm:$0xff]
      %v1501 = vld [vmem:[%s77 + $0x318] sm:$0xff]
      %v1502 = vld [vmem:[%s77 + $0x320] sm:$0xff]
      %v1503 = vld [vmem:[%s77 + $0x328] sm:$0xff]
      %v1504 = vld [vmem:[%s77 + $0x330] sm:$0xff]
      %v1505 = vld [vmem:[%s77 + $0x338] sm:$0xff]
      %v1506 = vld [vmem:[%s77 + $0x340] sm:$0xff]
      %v1507 = vld [vmem:[%s77 + $0x348] sm:$0xff]
      %v1508 = vld [vmem:[%s77 + $0x350] sm:$0xff]
      %v1509 = vld [vmem:[%s77 + $0x358] sm:$0xff]
      %v1510 = vld [vmem:[%s77 + $0x360] sm:$0xff]
      %v1511 = vld [vmem:[%s77 + $0x368] sm:$0xff]
      %v1512 = vld [vmem:[%s77 + $0x370] sm:$0xff]
      %v1513 = vld [vmem:[%s77 + $0x378] sm:$0xff]
      %v1514 = vld [vmem:[%s77 + $0x380] sm:$0xff]
      %v1515 = vld [vmem:[%s77 + $0x388] sm:$0xff]
      %v1516 = vsel %vm1250, %v1288, 1.0
      %v1517 = vsel %vm1250, %v1289, 1.0
      %v1518 = vsel %vm1250, %v1290, 1.0
      %v1519 = vsel %vm1251, %v1291, 1.0
      %v1520 = vsel %vm1251, %v1292, 1.0
      %v1521 = vsel %vm1251, %v1293, 1.0
      %v1522 = vsel %vm1252, %v1294, 1.0
      %v1523 = vsel %vm1252, %v1295, 1.0
      %v1524 = vsel %vm1252, %v1296, 1.0
      %v1525 = vsel %vm1253, %v1297, 1.0
      %v1526 = vsel %vm1253, %v1298, 1.0
      %v1527 = vsel %vm1253, %v1299, 1.0
      %v1528 = vsel %vm1254, %v1300, 1.0
      %v1529 = vsel %vm1254, %v1301, 1.0
      %v1530 = vsel %vm1254, %v1302, 1.0
      %v1531 = vsel %vm1255, %v1303, 1.0
      %v1532 = vsel %vm1255, %v1304, 1.0
      %v1533 = vsel %vm1255, %v1305, 1.0
      %v1534 = vsel %vm1256, %v1306, 1.0
      %v1535 = vsel %vm1256, %v1307, 1.0
      %v1536 = vsel %vm1256, %v1308, 1.0
      %v1537 = vsel %vm1257, %v1309, 1.0
      %v1538 = vsel %vm1257, %v1310, 1.0
      %v1539 = vsel %vm1257, %v1311, 1.0
      %v1540 = vsel %vm1258, %v1312, 1.0
      %v1541 = vsel %vm1258, %v1313, 1.0
      %v1542 = vsel %vm1258, %v1314, 1.0
      %v1543 = vsel %vm1259, %v1315, 1.0
      %v1544 = vsel %vm1259, %v1316, 1.0
      %v1545 = vsel %vm1259, %v1317, 1.0
      %v1546 = vsel %vm1260, %v1318, 1.0
      %v1547 = vsel %vm1260, %v1319, 1.0
      %v1548 = vsel %vm1260, %v1320, 1.0
      %v1549 = vsel %vm1261, %v1321, 1.0
      %v1550 = vsel %vm1261, %v1322, 1.0
      %v1551 = vsel %vm1261, %v1323, 1.0
      %v1552 = vsel %vm1262, %v1324, 1.0
      %v1553 = vsel %vm1262, %v1325, 1.0
      %v1554 = vsel %vm1262, %v1326, 1.0
      %v1555 = vsel %vm1263, %v1327, 1.0
      %v1556 = vsel %vm1263, %v1328, 1.0
      %v1557 = vsel %vm1263, %v1329, 1.0
      %v1558 = vsel %vm1264, %v1330, 1.0
      %v1559 = vsel %vm1264, %v1331, 1.0
      %v1560 = vsel %vm1264, %v1332, 1.0
      %v1561 = vsel %vm1265, %v1333, 1.0
      %v1562 = vsel %vm1265, %v1334, 1.0
      %v1563 = vsel %vm1265, %v1335, 1.0
      %v1564 = vsel %vm1266, %v1336, 1.0
      %v1565 = vsel %vm1266, %v1337, 1.0
      %v1566 = vsel %vm1266, %v1338, 1.0
      %v1567 = vsel %vm1267, %v1339, 1.0
      %v1568 = vsel %vm1267, %v1340, 1.0
      %v1569 = vsel %vm1267, %v1341, 1.0
      %v1570 = vsel %vm1268, %v1342, 1.0
      %v1571 = vsel %vm1268, %v1343, 1.0
      %v1572 = vsel %vm1268, %v1344, 1.0
      %v1573 = vsel %vm1269, %v1345, 1.0
      %v1574 = vsel %vm1269, %v1346, 1.0
      %v1575 = vsel %vm1269, %v1347, 1.0
      %v1576 = vsel %vm1270, %v1348, 1.0
      %v1577 = vsel %vm1270, %v1349, 1.0
      %v1578 = vsel %vm1270, %v1350, 1.0
      %v1579 = vsel %vm1271, %v1351, 1.0
      %v1580 = vsel %vm1271, %v1352, 1.0
      %v1581 = vsel %vm1271, %v1353, 1.0
      %v1582 = vsel %vm1272, %v1354, 1.0
      %v1583 = vsel %vm1272, %v1355, 1.0
      %v1584 = vsel %vm1272, %v1356, 1.0
      %v1585 = vsel %vm1273, %v1357, 1.0
      %v1586 = vsel %vm1273, %v1358, 1.0
      %v1587 = vsel %vm1273, %v1359, 1.0
      %v1588 = vsel %vm1274, %v1360, 1.0
      %v1589 = vsel %vm1274, %v1361, 1.0
      %v1590 = vsel %vm1274, %v1362, 1.0
      %v1591 = vsel %vm1275, %v1363, 1.0
      %v1592 = vsel %vm1275, %v1364, 1.0
      %v1593 = vsel %vm1275, %v1365, 1.0
      %v1594 = vsel %vm1276, %v1366, 1.0
      %v1595 = vsel %vm1276, %v1367, 1.0
      %v1596 = vsel %vm1276, %v1368, 1.0
      %v1597 = vsel %vm1277, %v1369, 1.0
      %v1598 = vsel %vm1277, %v1370, 1.0
      %v1599 = vsel %vm1277, %v1371, 1.0
      %v1600 = vsel %vm1278, %v1372, 1.0
      %v1601 = vsel %vm1278, %v1373, 1.0
      %v1602 = vsel %vm1278, %v1374, 1.0
      %v1603 = vsel %vm1279, %v1375, 1.0
      %v1604 = vsel %vm1279, %v1376, 1.0
      %v1605 = vsel %vm1279, %v1377, 1.0
      %v1606 = vsel %vm1280, %v1378, 1.0
      %v1607 = vsel %vm1280, %v1379, 1.0
      %v1608 = vsel %vm1280, %v1380, 1.0
      %v1609 = vsel %vm1281, %v1381, 1.0
      %v1610 = vsel %vm1281, %v1382, 1.0
      %v1611 = vsel %vm1281, %v1383, 1.0
      %v1612 = vsel %vm1282, %v1384, 1.0
      %v1613 = vsel %vm1282, %v1385, 1.0
      %v1614 = vsel %vm1282, %v1386, 1.0
      %v1615 = vsel %vm1283, %v1387, 1.0
      %v1616 = vsel %vm1283, %v1388, 1.0
      %v1617 = vsel %vm1283, %v1389, 1.0
      %v1618 = vsel %vm1284, %v1390, 1.0
      %v1619 = vsel %vm1284, %v1391, 1.0
      %v1620 = vsel %vm1284, %v1392, 1.0
      %v1621 = vsel %vm1285, %v1393, 1.0
      %v1622 = vsel %vm1285, %v1394, 1.0
      %v1623 = vsel %vm1285, %v1395, 1.0
      %v1624 = vsel %vm1286, %v1396, 1.0
      %v1625 = vsel %vm1286, %v1397, 1.0
      %v1626 = vsel %vm1286, %v1398, 1.0
      %v1627 = vsel %vm1287, %v1399, 1.0
      %v1628 = vsel %vm1287, %v1400, 1.0
      %v1629 = vsel %vm1287, %v1401, 1.0
      %v1630 = vsel %vm1250, %v1402, 1.0
      %v1631 = vsel %vm1250, %v1403, 1.0
      %v1632 = vsel %vm1250, %v1404, 1.0
      %v1633 = vsel %vm1251, %v1405, 1.0
      %v1634 = vsel %vm1251, %v1406, 1.0
      %v1635 = vsel %vm1251, %v1407, 1.0
      %v1636 = vsel %vm1252, %v1408, 1.0
      %v1637 = vsel %vm1252, %v1409, 1.0
      %v1638 = vsel %vm1252, %v1410, 1.0
      %v1639 = vsel %vm1253, %v1411, 1.0
      %v1640 = vsel %vm1253, %v1412, 1.0
      %v1641 = vsel %vm1253, %v1413, 1.0
      %v1642 = vsel %vm1254, %v1414, 1.0
      %v1643 = vsel %vm1254, %v1415, 1.0
      %v1644 = vsel %vm1254, %v1416, 1.0
      %v1645 = vsel %vm1255, %v1417, 1.0
      %v1646 = vsel %vm1255, %v1418, 1.0
      %v1647 = vsel %vm1255, %v1419, 1.0
      %v1648 = vsel %vm1256, %v1420, 1.0
      %v1649 = vsel %vm1256, %v1421, 1.0
      %v1650 = vsel %vm1256, %v1422, 1.0
      %v1651 = vsel %vm1257, %v1423, 1.0
      %v1652 = vsel %vm1257, %v1424, 1.0
      %v1653 = vsel %vm1257, %v1425, 1.0
      %v1654 = vsel %vm1258, %v1426, 1.0
      %v1655 = vsel %vm1258, %v1427, 1.0
      %v1656 = vsel %vm1258, %v1428, 1.0
      %v1657 = vsel %vm1259, %v1429, 1.0
      %v1658 = vsel %vm1259, %v1430, 1.0
      %v1659 = vsel %vm1259, %v1431, 1.0
      %v1660 = vsel %vm1260, %v1432, 1.0
      %v1661 = vsel %vm1260, %v1433, 1.0
      %v1662 = vsel %vm1260, %v1434, 1.0
      %v1663 = vsel %vm1261, %v1435, 1.0
      %v1664 = vsel %vm1261, %v1436, 1.0
      %v1665 = vsel %vm1261, %v1437, 1.0
      %v1666 = vsel %vm1262, %v1438, 1.0
      %v1667 = vsel %vm1262, %v1439, 1.0
      %v1668 = vsel %vm1262, %v1440, 1.0
      %v1669 = vsel %vm1263, %v1441, 1.0
      %v1670 = vsel %vm1263, %v1442, 1.0
      %v1671 = vsel %vm1263, %v1443, 1.0
      %v1672 = vsel %vm1264, %v1444, 1.0
      %v1673 = vsel %vm1264, %v1445, 1.0
      %v1674 = vsel %vm1264, %v1446, 1.0
      %v1675 = vsel %vm1265, %v1447, 1.0
      %v1676 = vsel %vm1265, %v1448, 1.0
      %v1677 = vsel %vm1265, %v1449, 1.0
      %v1678 = vsel %vm1266, %v1450, 1.0
      %v1679 = vsel %vm1266, %v1451, 1.0
      %v1680 = vsel %vm1266, %v1452, 1.0
      %v1681 = vsel %vm1267, %v1453, 1.0
      %v1682 = vsel %vm1267, %v1454, 1.0
      %v1683 = vsel %vm1267, %v1455, 1.0
      %v1684 = vsel %vm1268, %v1456, 1.0
      %v1685 = vsel %vm1268, %v1457, 1.0
      %v1686 = vsel %vm1268, %v1458, 1.0
      %v1687 = vsel %vm1269, %v1459, 1.0
      %v1688 = vsel %vm1269, %v1460, 1.0
      %v1689 = vsel %vm1269, %v1461, 1.0
      %v1690 = vsel %vm1270, %v1462, 1.0
      %v1691 = vsel %vm1270, %v1463, 1.0
      %v1692 = vsel %vm1270, %v1464, 1.0
      %v1693 = vsel %vm1271, %v1465, 1.0
      %v1694 = vsel %vm1271, %v1466, 1.0
      %v1695 = vsel %vm1271, %v1467, 1.0
      %v1696 = vsel %vm1272, %v1468, 1.0
      %v1697 = vsel %vm1272, %v1469, 1.0
      %v1698 = vsel %vm1272, %v1470, 1.0
      %v1699 = vsel %vm1273, %v1471, 1.0
      %v1700 = vsel %vm1273, %v1472, 1.0
      %v1701 = vsel %vm1273, %v1473, 1.0
      %v1702 = vsel %vm1274, %v1474, 1.0
      %v1703 = vsel %vm1274, %v1475, 1.0
      %v1704 = vsel %vm1274, %v1476, 1.0
      %v1705 = vsel %vm1275, %v1477, 1.0
      %v1706 = vsel %vm1275, %v1478, 1.0
      %v1707 = vsel %vm1275, %v1479, 1.0
      %v1708 = vsel %vm1276, %v1480, 1.0
      %v1709 = vsel %vm1276, %v1481, 1.0
      %v1710 = vsel %vm1276, %v1482, 1.0
      %v1711 = vsel %vm1277, %v1483, 1.0
      %v1712 = vsel %vm1277, %v1484, 1.0
      %v1713 = vsel %vm1277, %v1485, 1.0
      %v1714 = vsel %vm1278, %v1486, 1.0
      %v1715 = vsel %vm1278, %v1487, 1.0
      %v1716 = vsel %vm1278, %v1488, 1.0
      %v1717 = vsel %vm1279, %v1489, 1.0
      %v1718 = vsel %vm1279, %v1490, 1.0
      %v1719 = vsel %vm1279, %v1491, 1.0
      %v1720 = vsel %vm1280, %v1492, 1.0
      %v1721 = vsel %vm1280, %v1493, 1.0
      %v1722 = vsel %vm1280, %v1494, 1.0
      %v1723 = vsel %vm1281, %v1495, 1.0
      %v1724 = vsel %vm1281, %v1496, 1.0
      %v1725 = vsel %vm1281, %v1497, 1.0
      %v1726 = vsel %vm1282, %v1498, 1.0
      %v1727 = vsel %vm1282, %v1499, 1.0
      %v1728 = vsel %vm1282, %v1500, 1.0
      %v1729 = vsel %vm1283, %v1501, 1.0
      %v1730 = vsel %vm1283, %v1502, 1.0
      %v1731 = vsel %vm1283, %v1503, 1.0
      %v1732 = vsel %vm1284, %v1504, 1.0
      %v1733 = vsel %vm1284, %v1505, 1.0
      %v1734 = vsel %vm1284, %v1506, 1.0
      %v1735 = vsel %vm1285, %v1507, 1.0
      %v1736 = vsel %vm1285, %v1508, 1.0
      %v1737 = vsel %vm1285, %v1509, 1.0
      %v1738 = vsel %vm1286, %v1510, 1.0
      %v1739 = vsel %vm1286, %v1511, 1.0
      %v1740 = vsel %vm1286, %v1512, 1.0
      %v1741 = vsel %vm1287, %v1513, 1.0
      %v1742 = vsel %vm1287, %v1514, 1.0
      %v1743 = vsel %vm1287, %v1515, 1.0
      %v1744 = vlog2.pop %v1516
      %v1745 = vmul.f32 %v1744, 0.6931472
      %v1746 = vlog2.pop %v1517
      %v1747 = vmul.f32 %v1746, 0.6931472
      %v1748 = vlog2.pop %v1518
      %v1749 = vmul.f32 %v1748, 0.6931472
      %v1750 = vlog2.pop %v1519
      %v1751 = vmul.f32 %v1750, 0.6931472
      %v1752 = vlog2.pop %v1520
      %v1753 = vmul.f32 %v1752, 0.6931472
      %v1754 = vlog2.pop %v1521
      %v1755 = vmul.f32 %v1754, 0.6931472
      %v1756 = vlog2.pop %v1522
      %v1757 = vmul.f32 %v1756, 0.6931472
      %v1758 = vlog2.pop %v1523
      %v1759 = vmul.f32 %v1758, 0.6931472
      %v1760 = vlog2.pop %v1524
      %v1761 = vmul.f32 %v1760, 0.6931472
      %v1762 = vlog2.pop %v1525
      %v1763 = vmul.f32 %v1762, 0.6931472
      %v1764 = vlog2.pop %v1526
      %v1765 = vmul.f32 %v1764, 0.6931472
      %v1766 = vlog2.pop %v1527
      %v1767 = vmul.f32 %v1766, 0.6931472
      %v1768 = vlog2.pop %v1528
      %v1769 = vmul.f32 %v1768, 0.6931472
      %v1770 = vlog2.pop %v1529
      %v1771 = vmul.f32 %v1770, 0.6931472
      %v1772 = vlog2.pop %v1530
      %v1773 = vmul.f32 %v1772, 0.6931472
      %v1774 = vlog2.pop %v1531
      %v1775 = vmul.f32 %v1774, 0.6931472
      %v1776 = vlog2.pop %v1532
      %v1777 = vmul.f32 %v1776, 0.6931472
      %v1778 = vlog2.pop %v1533
      %v1779 = vmul.f32 %v1778, 0.6931472
      %v1780 = vlog2.pop %v1534
      %v1781 = vmul.f32 %v1780, 0.6931472
      %v1782 = vlog2.pop %v1535
      %v1783 = vmul.f32 %v1782, 0.6931472
      %v1784 = vlog2.pop %v1536
      %v1785 = vmul.f32 %v1784, 0.6931472
      %v1786 = vlog2.pop %v1537
      %v1787 = vmul.f32 %v1786, 0.6931472
      %v1788 = vlog2.pop %v1538
      %v1789 = vmul.f32 %v1788, 0.6931472
      %v1790 = vlog2.pop %v1539
      %v1791 = vmul.f32 %v1790, 0.6931472
      %v1792 = vlog2.pop %v1540
      %v1793 = vmul.f32 %v1792, 0.6931472
      %v1794 = vlog2.pop %v1541
      %v1795 = vmul.f32 %v1794, 0.6931472
      %v1796 = vlog2.pop %v1542
      %v1797 = vmul.f32 %v1796, 0.6931472
      %v1798 = vlog2.pop %v1543
      %v1799 = vmul.f32 %v1798, 0.6931472
      %v1800 = vlog2.pop %v1544
      %v1801 = vmul.f32 %v1800, 0.6931472
      %v1802 = vlog2.pop %v1545
      %v1803 = vmul.f32 %v1802, 0.6931472
      %v1804 = vlog2.pop %v1546
      %v1805 = vmul.f32 %v1804, 0.6931472
      %v1806 = vlog2.pop %v1547
      %v1807 = vmul.f32 %v1806, 0.6931472
      %v1808 = vlog2.pop %v1548
      %v1809 = vmul.f32 %v1808, 0.6931472
      %v1810 = vlog2.pop %v1549
      %v1811 = vmul.f32 %v1810, 0.6931472
      %v1812 = vlog2.pop %v1550
      %v1813 = vmul.f32 %v1812, 0.6931472
      %v1814 = vlog2.pop %v1551
      %v1815 = vmul.f32 %v1814, 0.6931472
      %v1816 = vlog2.pop %v1552
      %v1817 = vmul.f32 %v1816, 0.6931472
      %v1818 = vlog2.pop %v1553
      %v1819 = vmul.f32 %v1818, 0.6931472
      %v1820 = vlog2.pop %v1554
      %v1821 = vmul.f32 %v1820, 0.6931472
      %v1822 = vlog2.pop %v1555
      %v1823 = vmul.f32 %v1822, 0.6931472
      %v1824 = vlog2.pop %v1556
      %v1825 = vmul.f32 %v1824, 0.6931472
      %v1826 = vlog2.pop %v1557
      %v1827 = vmul.f32 %v1826, 0.6931472
      %v1828 = vlog2.pop %v1558
      %v1829 = vmul.f32 %v1828, 0.6931472
      %v1830 = vlog2.pop %v1559
      %v1831 = vmul.f32 %v1830, 0.6931472
      %v1832 = vlog2.pop %v1560
      %v1833 = vmul.f32 %v1832, 0.6931472
      %v1834 = vlog2.pop %v1561
      %v1835 = vmul.f32 %v1834, 0.6931472
      %v1836 = vlog2.pop %v1562
      %v1837 = vmul.f32 %v1836, 0.6931472
      %v1838 = vlog2.pop %v1563
      %v1839 = vmul.f32 %v1838, 0.6931472
      %v1840 = vlog2.pop %v1564
      %v1841 = vmul.f32 %v1840, 0.6931472
      %v1842 = vlog2.pop %v1565
      %v1843 = vmul.f32 %v1842, 0.6931472
      %v1844 = vlog2.pop %v1566
      %v1845 = vmul.f32 %v1844, 0.6931472
      %v1846 = vlog2.pop %v1567
      %v1847 = vmul.f32 %v1846, 0.6931472
      %v1848 = vlog2.pop %v1568
      %v1849 = vmul.f32 %v1848, 0.6931472
      %v1850 = vlog2.pop %v1569
      %v1851 = vmul.f32 %v1850, 0.6931472
      %v1852 = vlog2.pop %v1570
      %v1853 = vmul.f32 %v1852, 0.6931472
      %v1854 = vlog2.pop %v1571
      %v1855 = vmul.f32 %v1854, 0.6931472
      %v1856 = vlog2.pop %v1572
      %v1857 = vmul.f32 %v1856, 0.6931472
      %v1858 = vlog2.pop %v1573
      %v1859 = vmul.f32 %v1858, 0.6931472
      %v1860 = vlog2.pop %v1574
      %v1861 = vmul.f32 %v1860, 0.6931472
      %v1862 = vlog2.pop %v1575
      %v1863 = vmul.f32 %v1862, 0.6931472
      %v1864 = vlog2.pop %v1576
      %v1865 = vmul.f32 %v1864, 0.6931472
      %v1866 = vlog2.pop %v1577
      %v1867 = vmul.f32 %v1866, 0.6931472
      %v1868 = vlog2.pop %v1578
      %v1869 = vmul.f32 %v1868, 0.6931472
      %v1870 = vlog2.pop %v1579
      %v1871 = vmul.f32 %v1870, 0.6931472
      %v1872 = vlog2.pop %v1580
      %v1873 = vmul.f32 %v1872, 0.6931472
      %v1874 = vlog2.pop %v1581
      %v1875 = vmul.f32 %v1874, 0.6931472
      %v1876 = vlog2.pop %v1582
      %v1877 = vmul.f32 %v1876, 0.6931472
      %v1878 = vlog2.pop %v1583
      %v1879 = vmul.f32 %v1878, 0.6931472
      %v1880 = vlog2.pop %v1584
      %v1881 = vmul.f32 %v1880, 0.6931472
      %v1882 = vlog2.pop %v1585
      %v1883 = vmul.f32 %v1882, 0.6931472
      %v1884 = vlog2.pop %v1586
      %v1885 = vmul.f32 %v1884, 0.6931472
      %v1886 = vlog2.pop %v1587
      %v1887 = vmul.f32 %v1886, 0.6931472
      %v1888 = vlog2.pop %v1588
      %v1889 = vmul.f32 %v1888, 0.6931472
      %v1890 = vlog2.pop %v1589
      %v1891 = vmul.f32 %v1890, 0.6931472
      %v1892 = vlog2.pop %v1590
      %v1893 = vmul.f32 %v1892, 0.6931472
      %v1894 = vlog2.pop %v1591
      %v1895 = vmul.f32 %v1894, 0.6931472
      %v1896 = vlog2.pop %v1592
      %v1897 = vmul.f32 %v1896, 0.6931472
      %v1898 = vlog2.pop %v1593
      %v1899 = vmul.f32 %v1898, 0.6931472
      %v1900 = vlog2.pop %v1594
      %v1901 = vmul.f32 %v1900, 0.6931472
      %v1902 = vlog2.pop %v1595
      %v1903 = vmul.f32 %v1902, 0.6931472
      %v1904 = vlog2.pop %v1596
      %v1905 = vmul.f32 %v1904, 0.6931472
      %v1906 = vlog2.pop %v1597
      %v1907 = vmul.f32 %v1906, 0.6931472
      %v1908 = vlog2.pop %v1598
      %v1909 = vmul.f32 %v1908, 0.6931472
      %v1910 = vlog2.pop %v1599
      %v1911 = vmul.f32 %v1910, 0.6931472
      %v1912 = vlog2.pop %v1600
      %v1913 = vmul.f32 %v1912, 0.6931472
      %v1914 = vlog2.pop %v1601
      %v1915 = vmul.f32 %v1914, 0.6931472
      %v1916 = vlog2.pop %v1602
      %v1917 = vmul.f32 %v1916, 0.6931472
      %v1918 = vlog2.pop %v1603
      %v1919 = vmul.f32 %v1918, 0.6931472
      %v1920 = vlog2.pop %v1604
      %v1921 = vmul.f32 %v1920, 0.6931472
      %v1922 = vlog2.pop %v1605
      %v1923 = vmul.f32 %v1922, 0.6931472
      %v1924 = vlog2.pop %v1606
      %v1925 = vmul.f32 %v1924, 0.6931472
      %v1926 = vlog2.pop %v1607
      %v1927 = vmul.f32 %v1926, 0.6931472
      %v1928 = vlog2.pop %v1608
      %v1929 = vmul.f32 %v1928, 0.6931472
      %v1930 = vlog2.pop %v1609
      %v1931 = vmul.f32 %v1930, 0.6931472
      %v1932 = vlog2.pop %v1610
      %v1933 = vmul.f32 %v1932, 0.6931472
      %v1934 = vlog2.pop %v1611
      %v1935 = vmul.f32 %v1934, 0.6931472
      %v1936 = vlog2.pop %v1612
      %v1937 = vmul.f32 %v1936, 0.6931472
      %v1938 = vlog2.pop %v1613
      %v1939 = vmul.f32 %v1938, 0.6931472
      %v1940 = vlog2.pop %v1614
      %v1941 = vmul.f32 %v1940, 0.6931472
      %v1942 = vlog2.pop %v1615
      %v1943 = vmul.f32 %v1942, 0.6931472
      %v1944 = vlog2.pop %v1616
      %v1945 = vmul.f32 %v1944, 0.6931472
      %v1946 = vlog2.pop %v1617
      %v1947 = vmul.f32 %v1946, 0.6931472
      %v1948 = vlog2.pop %v1618
      %v1949 = vmul.f32 %v1948, 0.6931472
      %v1950 = vlog2.pop %v1619
      %v1951 = vmul.f32 %v1950, 0.6931472
      %v1952 = vlog2.pop %v1620
      %v1953 = vmul.f32 %v1952, 0.6931472
      %v1954 = vlog2.pop %v1621
      %v1955 = vmul.f32 %v1954, 0.6931472
      %v1956 = vlog2.pop %v1622
      %v1957 = vmul.f32 %v1956, 0.6931472
      %v1958 = vlog2.pop %v1623
      %v1959 = vmul.f32 %v1958, 0.6931472
      %v1960 = vlog2.pop %v1624
      %v1961 = vmul.f32 %v1960, 0.6931472
      %v1962 = vlog2.pop %v1625
      %v1963 = vmul.f32 %v1962, 0.6931472
      %v1964 = vlog2.pop %v1626
      %v1965 = vmul.f32 %v1964, 0.6931472
      %v1966 = vlog2.pop %v1627
      %v1967 = vmul.f32 %v1966, 0.6931472
      %v1968 = vlog2.pop %v1628
      %v1969 = vmul.f32 %v1968, 0.6931472
      %v1970 = vlog2.pop %v1629
      %v1971 = vmul.f32 %v1970, 0.6931472
      %v1972 = vlog2.pop %v1630
      %v1973 = vmul.f32 %v1972, 0.6931472
      %v1974 = vlog2.pop %v1631
      %v1975 = vmul.f32 %v1974, 0.6931472
      %v1976 = vlog2.pop %v1632
      %v1977 = vmul.f32 %v1976, 0.6931472
      %v1978 = vlog2.pop %v1633
      %v1979 = vmul.f32 %v1978, 0.6931472
      %v1980 = vlog2.pop %v1634
      %v1981 = vmul.f32 %v1980, 0.6931472
      %v1982 = vlog2.pop %v1635
      %v1983 = vmul.f32 %v1982, 0.6931472
      %v1984 = vlog2.pop %v1636
      %v1985 = vmul.f32 %v1984, 0.6931472
      %v1986 = vlog2.pop %v1637
      %v1987 = vmul.f32 %v1986, 0.6931472
      %v1988 = vlog2.pop %v1638
      %v1989 = vmul.f32 %v1988, 0.6931472
      %v1990 = vlog2.pop %v1639
      %v1991 = vmul.f32 %v1990, 0.6931472
      %v1992 = vlog2.pop %v1640
      %v1993 = vmul.f32 %v1992, 0.6931472
      %v1994 = vlog2.pop %v1641
      %v1995 = vmul.f32 %v1994, 0.6931472
      %v1996 = vlog2.pop %v1642
      %v1997 = vmul.f32 %v1996, 0.6931472
      %v1998 = vlog2.pop %v1643
      %v1999 = vmul.f32 %v1998, 0.6931472
      %v2000 = vlog2.pop %v1644
      %v2001 = vmul.f32 %v2000, 0.6931472
      %v2002 = vlog2.pop %v1645
      %v2003 = vmul.f32 %v2002, 0.6931472
      %v2004 = vlog2.pop %v1646
      %v2005 = vmul.f32 %v2004, 0.6931472
      %v2006 = vlog2.pop %v1647
      %v2007 = vmul.f32 %v2006, 0.6931472
      %v2008 = vlog2.pop %v1648
      %v2009 = vmul.f32 %v2008, 0.6931472
      %v2010 = vlog2.pop %v1649
      %v2011 = vmul.f32 %v2010, 0.6931472
      %v2012 = vlog2.pop %v1650
      %v2013 = vmul.f32 %v2012, 0.6931472
      %v2014 = vlog2.pop %v1651
      %v2015 = vmul.f32 %v2014, 0.6931472
      %v2016 = vlog2.pop %v1652
      %v2017 = vmul.f32 %v2016, 0.6931472
      %v2018 = vlog2.pop %v1653
      %v2019 = vmul.f32 %v2018, 0.6931472
      %v2020 = vlog2.pop %v1654
      %v2021 = vmul.f32 %v2020, 0.6931472
      %v2022 = vlog2.pop %v1655
      %v2023 = vmul.f32 %v2022, 0.6931472
      %v2024 = vlog2.pop %v1656
      %v2025 = vmul.f32 %v2024, 0.6931472
      %v2026 = vlog2.pop %v1657
      %v2027 = vmul.f32 %v2026, 0.6931472
      %v2028 = vlog2.pop %v1658
      %v2029 = vmul.f32 %v2028, 0.6931472
      %v2030 = vlog2.pop %v1659
      %v2031 = vmul.f32 %v2030, 0.6931472
      %v2032 = vlog2.pop %v1660
      %v2033 = vmul.f32 %v2032, 0.6931472
      %v2034 = vlog2.pop %v1661
      %v2035 = vmul.f32 %v2034, 0.6931472
      %v2036 = vlog2.pop %v1662
      %v2037 = vmul.f32 %v2036, 0.6931472
      %v2038 = vlog2.pop %v1663
      %v2039 = vmul.f32 %v2038, 0.6931472
      %v2040 = vlog2.pop %v1664
      %v2041 = vmul.f32 %v2040, 0.6931472
      %v2042 = vlog2.pop %v1665
      %v2043 = vmul.f32 %v2042, 0.6931472
      %v2044 = vlog2.pop %v1666
      %v2045 = vmul.f32 %v2044, 0.6931472
      %v2046 = vlog2.pop %v1667
      %v2047 = vmul.f32 %v2046, 0.6931472
      %v2048 = vlog2.pop %v1668
      %v2049 = vmul.f32 %v2048, 0.6931472
      %v2050 = vlog2.pop %v1669
      %v2051 = vmul.f32 %v2050, 0.6931472
      %v2052 = vlog2.pop %v1670
      %v2053 = vmul.f32 %v2052, 0.6931472
      %v2054 = vlog2.pop %v1671
      %v2055 = vmul.f32 %v2054, 0.6931472
      %v2056 = vlog2.pop %v1672
      %v2057 = vmul.f32 %v2056, 0.6931472
      %v2058 = vlog2.pop %v1673
      %v2059 = vmul.f32 %v2058, 0.6931472
      %v2060 = vlog2.pop %v1674
      %v2061 = vmul.f32 %v2060, 0.6931472
      %v2062 = vlog2.pop %v1675
      %v2063 = vmul.f32 %v2062, 0.6931472
      %v2064 = vlog2.pop %v1676
      %v2065 = vmul.f32 %v2064, 0.6931472
      %v2066 = vlog2.pop %v1677
      %v2067 = vmul.f32 %v2066, 0.6931472
      %v2068 = vlog2.pop %v1678
      %v2069 = vmul.f32 %v2068, 0.6931472
      %v2070 = vlog2.pop %v1679
      %v2071 = vmul.f32 %v2070, 0.6931472
      %v2072 = vlog2.pop %v1680
      %v2073 = vmul.f32 %v2072, 0.6931472
      %v2074 = vlog2.pop %v1681
      %v2075 = vmul.f32 %v2074, 0.6931472
      %v2076 = vlog2.pop %v1682
      %v2077 = vmul.f32 %v2076, 0.6931472
      %v2078 = vlog2.pop %v1683
      %v2079 = vmul.f32 %v2078, 0.6931472
      %v2080 = vlog2.pop %v1684
      %v2081 = vmul.f32 %v2080, 0.6931472
      %v2082 = vlog2.pop %v1685
      %v2083 = vmul.f32 %v2082, 0.6931472
      %v2084 = vlog2.pop %v1686
      %v2085 = vmul.f32 %v2084, 0.6931472
      %v2086 = vlog2.pop %v1687
      %v2087 = vmul.f32 %v2086, 0.6931472
      %v2088 = vlog2.pop %v1688
      %v2089 = vmul.f32 %v2088, 0.6931472
      %v2090 = vlog2.pop %v1689
      %v2091 = vmul.f32 %v2090, 0.6931472
      %v2092 = vlog2.pop %v1690
      %v2093 = vmul.f32 %v2092, 0.6931472
      %v2094 = vlog2.pop %v1691
      %v2095 = vmul.f32 %v2094, 0.6931472
      %v2096 = vlog2.pop %v1692
      %v2097 = vmul.f32 %v2096, 0.6931472
      %v2098 = vlog2.pop %v1693
      %v2099 = vmul.f32 %v2098, 0.6931472
      %v2100 = vlog2.pop %v1694
      %v2101 = vmul.f32 %v2100, 0.6931472
      %v2102 = vlog2.pop %v1695
      %v2103 = vmul.f32 %v2102, 0.6931472
      %v2104 = vlog2.pop %v1696
      %v2105 = vmul.f32 %v2104, 0.6931472
      %v2106 = vlog2.pop %v1697
      %v2107 = vmul.f32 %v2106, 0.6931472
      %v2108 = vlog2.pop %v1698
      %v2109 = vmul.f32 %v2108, 0.6931472
      %v2110 = vlog2.pop %v1699
      %v2111 = vmul.f32 %v2110, 0.6931472
      %v2112 = vlog2.pop %v1700
      %v2113 = vmul.f32 %v2112, 0.6931472
      %v2114 = vlog2.pop %v1701
      %v2115 = vmul.f32 %v2114, 0.6931472
      %v2116 = vlog2.pop %v1702
      %v2117 = vmul.f32 %v2116, 0.6931472
      %v2118 = vlog2.pop %v1703
      %v2119 = vmul.f32 %v2118, 0.6931472
      %v2120 = vlog2.pop %v1704
      %v2121 = vmul.f32 %v2120, 0.6931472
      %v2122 = vlog2.pop %v1705
      %v2123 = vmul.f32 %v2122, 0.6931472
      %v2124 = vlog2.pop %v1706
      %v2125 = vmul.f32 %v2124, 0.6931472
      %v2126 = vlog2.pop %v1707
      %v2127 = vmul.f32 %v2126, 0.6931472
      %v2128 = vlog2.pop %v1708
      %v2129 = vmul.f32 %v2128, 0.6931472
      %v2130 = vlog2.pop %v1709
      %v2131 = vmul.f32 %v2130, 0.6931472
      %v2132 = vlog2.pop %v1710
      %v2133 = vmul.f32 %v2132, 0.6931472
      %v2134 = vlog2.pop %v1711
      %v2135 = vmul.f32 %v2134, 0.6931472
      %v2136 = vlog2.pop %v1712
      %v2137 = vmul.f32 %v2136, 0.6931472
      %v2138 = vlog2.pop %v1713
      %v2139 = vmul.f32 %v2138, 0.6931472
      %v2140 = vlog2.pop %v1714
      %v2141 = vmul.f32 %v2140, 0.6931472
      %v2142 = vlog2.pop %v1715
      %v2143 = vmul.f32 %v2142, 0.6931472
      %v2144 = vlog2.pop %v1716
      %v2145 = vmul.f32 %v2144, 0.6931472
      %v2146 = vlog2.pop %v1717
      %v2147 = vmul.f32 %v2146, 0.6931472
      %v2148 = vlog2.pop %v1718
      %v2149 = vmul.f32 %v2148, 0.6931472
      %v2150 = vlog2.pop %v1719
      %v2151 = vmul.f32 %v2150, 0.6931472
      %v2152 = vlog2.pop %v1720
      %v2153 = vmul.f32 %v2152, 0.6931472
      %v2154 = vlog2.pop %v1721
      %v2155 = vmul.f32 %v2154, 0.6931472
      %v2156 = vlog2.pop %v1722
      %v2157 = vmul.f32 %v2156, 0.6931472
      %v2158 = vlog2.pop %v1723
      %v2159 = vmul.f32 %v2158, 0.6931472
      %v2160 = vlog2.pop %v1724
      %v2161 = vmul.f32 %v2160, 0.6931472
      %v2162 = vlog2.pop %v1725
      %v2163 = vmul.f32 %v2162, 0.6931472
      %v2164 = vlog2.pop %v1726
      %v2165 = vmul.f32 %v2164, 0.6931472
      %v2166 = vlog2.pop %v1727
      %v2167 = vmul.f32 %v2166, 0.6931472
      %v2168 = vlog2.pop %v1728
      %v2169 = vmul.f32 %v2168, 0.6931472
      %v2170 = vlog2.pop %v1729
      %v2171 = vmul.f32 %v2170, 0.6931472
      %v2172 = vlog2.pop %v1730
      %v2173 = vmul.f32 %v2172, 0.6931472
      %v2174 = vlog2.pop %v1731
      %v2175 = vmul.f32 %v2174, 0.6931472
      %v2176 = vlog2.pop %v1732
      %v2177 = vmul.f32 %v2176, 0.6931472
      %v2178 = vlog2.pop %v1733
      %v2179 = vmul.f32 %v2178, 0.6931472
      %v2180 = vlog2.pop %v1734
      %v2181 = vmul.f32 %v2180, 0.6931472
      %v2182 = vlog2.pop %v1735
      %v2183 = vmul.f32 %v2182, 0.6931472
      %v2184 = vlog2.pop %v1736
      %v2185 = vmul.f32 %v2184, 0.6931472
      %v2186 = vlog2.pop %v1737
      %v2187 = vmul.f32 %v2186, 0.6931472
      %v2188 = vlog2.pop %v1738
      %v2189 = vmul.f32 %v2188, 0.6931472
      %v2190 = vlog2.pop %v1739
      %v2191 = vmul.f32 %v2190, 0.6931472
      %v2192 = vlog2.pop %v1740
      %v2193 = vmul.f32 %v2192, 0.6931472
      %v2194 = vlog2.pop %v1741
      %v2195 = vmul.f32 %v2194, 0.6931472
      %v2196 = vlog2.pop %v1742
      %v2197 = vmul.f32 %v2196, 0.6931472
      %v2198 = vlog2.pop %v1743
      %v2199 = vmul.f32 %v2198, 0.6931472
      %v2200 = vsub.f32 %v1745, %v1973
      %v2201 = vsub.f32 %v1747, %v1975
      %v2202 = vsub.f32 %v1749, %v1977
      %v2203 = vsub.f32 %v1751, %v1979
      %v2204 = vsub.f32 %v1753, %v1981
      %v2205 = vsub.f32 %v1755, %v1983
      %v2206 = vsub.f32 %v1757, %v1985
      %v2207 = vsub.f32 %v1759, %v1987
      %v2208 = vsub.f32 %v1761, %v1989
      %v2209 = vsub.f32 %v1763, %v1991
      %v2210 = vsub.f32 %v1765, %v1993
      %v2211 = vsub.f32 %v1767, %v1995
      %v2212 = vsub.f32 %v1769, %v1997
      %v2213 = vsub.f32 %v1771, %v1999
      %v2214 = vsub.f32 %v1773, %v2001
      %v2215 = vsub.f32 %v1775, %v2003
      %v2216 = vsub.f32 %v1777, %v2005
      %v2217 = vsub.f32 %v1779, %v2007
      %v2218 = vsub.f32 %v1781, %v2009
      %v2219 = vsub.f32 %v1783, %v2011
      %v2220 = vsub.f32 %v1785, %v2013
      %v2221 = vsub.f32 %v1787, %v2015
      %v2222 = vsub.f32 %v1789, %v2017
      %v2223 = vsub.f32 %v1791, %v2019
      %v2224 = vsub.f32 %v1793, %v2021
      %v2225 = vsub.f32 %v1795, %v2023
      %v2226 = vsub.f32 %v1797, %v2025
      %v2227 = vsub.f32 %v1799, %v2027
      %v2228 = vsub.f32 %v1801, %v2029
      %v2229 = vsub.f32 %v1803, %v2031
      %v2230 = vsub.f32 %v1805, %v2033
      %v2231 = vsub.f32 %v1807, %v2035
      %v2232 = vsub.f32 %v1809, %v2037
      %v2233 = vsub.f32 %v1811, %v2039
      %v2234 = vsub.f32 %v1813, %v2041
      %v2235 = vsub.f32 %v1815, %v2043
      %v2236 = vsub.f32 %v1817, %v2045
      %v2237 = vsub.f32 %v1819, %v2047
      %v2238 = vsub.f32 %v1821, %v2049
      %v2239 = vsub.f32 %v1823, %v2051
      %v2240 = vsub.f32 %v1825, %v2053
      %v2241 = vsub.f32 %v1827, %v2055
      %v2242 = vsub.f32 %v1829, %v2057
      %v2243 = vsub.f32 %v1831, %v2059
      %v2244 = vsub.f32 %v1833, %v2061
      %v2245 = vsub.f32 %v1835, %v2063
      %v2246 = vsub.f32 %v1837, %v2065
      %v2247 = vsub.f32 %v1839, %v2067
      %v2248 = vsub.f32 %v1841, %v2069
      %v2249 = vsub.f32 %v1843, %v2071
      %v2250 = vsub.f32 %v1845, %v2073
      %v2251 = vsub.f32 %v1847, %v2075
      %v2252 = vsub.f32 %v1849, %v2077
      %v2253 = vsub.f32 %v1851, %v2079
      %v2254 = vsub.f32 %v1853, %v2081
      %v2255 = vsub.f32 %v1855, %v2083
      %v2256 = vsub.f32 %v1857, %v2085
      %v2257 = vsub.f32 %v1859, %v2087
      %v2258 = vsub.f32 %v1861, %v2089
      %v2259 = vsub.f32 %v1863, %v2091
      %v2260 = vsub.f32 %v1865, %v2093
      %v2261 = vsub.f32 %v1867, %v2095
      %v2262 = vsub.f32 %v1869, %v2097
      %v2263 = vsub.f32 %v1871, %v2099
      %v2264 = vsub.f32 %v1873, %v2101
      %v2265 = vsub.f32 %v1875, %v2103
      %v2266 = vsub.f32 %v1877, %v2105
      %v2267 = vsub.f32 %v1879, %v2107
      %v2268 = vsub.f32 %v1881, %v2109
      %v2269 = vsub.f32 %v1883, %v2111
      %v2270 = vsub.f32 %v1885, %v2113
      %v2271 = vsub.f32 %v1887, %v2115
      %v2272 = vsub.f32 %v1889, %v2117
      %v2273 = vsub.f32 %v1891, %v2119
      %v2274 = vsub.f32 %v1893, %v2121
      %v2275 = vsub.f32 %v1895, %v2123
      %v2276 = vsub.f32 %v1897, %v2125
      %v2277 = vsub.f32 %v1899, %v2127
      %v2278 = vsub.f32 %v1901, %v2129
      %v2279 = vsub.f32 %v1903, %v2131
      %v2280 = vsub.f32 %v1905, %v2133
      %v2281 = vsub.f32 %v1907, %v2135
      %v2282 = vsub.f32 %v1909, %v2137
      %v2283 = vsub.f32 %v1911, %v2139
      %v2284 = vsub.f32 %v1913, %v2141
      %v2285 = vsub.f32 %v1915, %v2143
      %v2286 = vsub.f32 %v1917, %v2145
      %v2287 = vsub.f32 %v1919, %v2147
      %v2288 = vsub.f32 %v1921, %v2149
      %v2289 = vsub.f32 %v1923, %v2151
      %v2290 = vsub.f32 %v1925, %v2153
      %v2291 = vsub.f32 %v1927, %v2155
      %v2292 = vsub.f32 %v1929, %v2157
      %v2293 = vsub.f32 %v1931, %v2159
      %v2294 = vsub.f32 %v1933, %v2161
      %v2295 = vsub.f32 %v1935, %v2163
      %v2296 = vsub.f32 %v1937, %v2165
      %v2297 = vsub.f32 %v1939, %v2167
      %v2298 = vsub.f32 %v1941, %v2169
      %v2299 = vsub.f32 %v1943, %v2171
      %v2300 = vsub.f32 %v1945, %v2173
      %v2301 = vsub.f32 %v1947, %v2175
      %v2302 = vsub.f32 %v1949, %v2177
      %v2303 = vsub.f32 %v1951, %v2179
      %v2304 = vsub.f32 %v1953, %v2181
      %v2305 = vsub.f32 %v1955, %v2183
      %v2306 = vsub.f32 %v1957, %v2185
      %v2307 = vsub.f32 %v1959, %v2187
      %v2308 = vsub.f32 %v1961, %v2189
      %v2309 = vsub.f32 %v1963, %v2191
      %v2310 = vsub.f32 %v1965, %v2193
      %v2311 = vsub.f32 %v1967, %v2195
      %v2312 = vsub.f32 %v1969, %v2197
      %v2313 = vsub.f32 %v1971, %v2199
      %v2314 = vmul.f32 %v2200, %v2200
      %v2315 = vmul.f32 %v2201, %v2201
      %v2316 = vmul.f32 %v2202, %v2202
      %v2317 = vmul.f32 %v2203, %v2203
      %v2318 = vmul.f32 %v2204, %v2204
      %v2319 = vmul.f32 %v2205, %v2205
      %v2320 = vmul.f32 %v2206, %v2206
      %v2321 = vmul.f32 %v2207, %v2207
      %v2322 = vmul.f32 %v2208, %v2208
      %v2323 = vmul.f32 %v2209, %v2209
      %v2324 = vmul.f32 %v2210, %v2210
      %v2325 = vmul.f32 %v2211, %v2211
      %v2326 = vmul.f32 %v2212, %v2212
      %v2327 = vmul.f32 %v2213, %v2213
      %v2328 = vmul.f32 %v2214, %v2214
      %v2329 = vmul.f32 %v2215, %v2215
      %v2330 = vmul.f32 %v2216, %v2216
      %v2331 = vmul.f32 %v2217, %v2217
      %v2332 = vmul.f32 %v2218, %v2218
      %v2333 = vmul.f32 %v2219, %v2219
      %v2334 = vmul.f32 %v2220, %v2220
      %v2335 = vmul.f32 %v2221, %v2221
      %v2336 = vmul.f32 %v2222, %v2222
      %v2337 = vmul.f32 %v2223, %v2223
      %v2338 = vmul.f32 %v2224, %v2224
      %v2339 = vmul.f32 %v2225, %v2225
      %v2340 = vmul.f32 %v2226, %v2226
      %v2341 = vmul.f32 %v2227, %v2227
      %v2342 = vmul.f32 %v2228, %v2228
      %v2343 = vmul.f32 %v2229, %v2229
      %v2344 = vmul.f32 %v2230, %v2230
      %v2345 = vmul.f32 %v2231, %v2231
      %v2346 = vmul.f32 %v2232, %v2232
      %v2347 = vmul.f32 %v2233, %v2233
      %v2348 = vmul.f32 %v2234, %v2234
      %v2349 = vmul.f32 %v2235, %v2235
      %v2350 = vmul.f32 %v2236, %v2236
      %v2351 = vmul.f32 %v2237, %v2237
      %v2352 = vmul.f32 %v2238, %v2238
      %v2353 = vmul.f32 %v2239, %v2239
      %v2354 = vmul.f32 %v2240, %v2240
      %v2355 = vmul.f32 %v2241, %v2241
      %v2356 = vmul.f32 %v2242, %v2242
      %v2357 = vmul.f32 %v2243, %v2243
      %v2358 = vmul.f32 %v2244, %v2244
      %v2359 = vmul.f32 %v2245, %v2245
      %v2360 = vmul.f32 %v2246, %v2246
      %v2361 = vmul.f32 %v2247, %v2247
      %v2362 = vmul.f32 %v2248, %v2248
      %v2363 = vmul.f32 %v2249, %v2249
      %v2364 = vmul.f32 %v2250, %v2250
      %v2365 = vmul.f32 %v2251, %v2251
      %v2366 = vmul.f32 %v2252, %v2252
      %v2367 = vmul.f32 %v2253, %v2253
      %v2368 = vmul.f32 %v2254, %v2254
      %v2369 = vmul.f32 %v2255, %v2255
      %v2370 = vmul.f32 %v2256, %v2256
      %v2371 = vmul.f32 %v2257, %v2257
      %v2372 = vmul.f32 %v2258, %v2258
      %v2373 = vmul.f32 %v2259, %v2259
      %v2374 = vmul.f32 %v2260, %v2260
      %v2375 = vmul.f32 %v2261, %v2261
      %v2376 = vmul.f32 %v2262, %v2262
      %v2377 = vmul.f32 %v2263, %v2263
      %v2378 = vmul.f32 %v2264, %v2264
      %v2379 = vmul.f32 %v2265, %v2265
      %v2380 = vmul.f32 %v2266, %v2266
      %v2381 = vmul.f32 %v2267, %v2267
      %v2382 = vmul.f32 %v2268, %v2268
      %v2383 = vmul.f32 %v2269, %v2269
      %v2384 = vmul.f32 %v2270, %v2270
      %v2385 = vmul.f32 %v2271, %v2271
      %v2386 = vmul.f32 %v2272, %v2272
      %v2387 = vmul.f32 %v2273, %v2273
      %v2388 = vmul.f32 %v2274, %v2274
      %v2389 = vmul.f32 %v2275, %v2275
      %v2390 = vmul.f32 %v2276, %v2276
      %v2391 = vmul.f32 %v2277, %v2277
      %v2392 = vmul.f32 %v2278, %v2278
      %v2393 = vmul.f32 %v2279, %v2279
      %v2394 = vmul.f32 %v2280, %v2280
      %v2395 = vmul.f32 %v2281, %v2281
      %v2396 = vmul.f32 %v2282, %v2282
      %v2397 = vmul.f32 %v2283, %v2283
      %v2398 = vmul.f32 %v2284, %v2284
      %v2399 = vmul.f32 %v2285, %v2285
      %v2400 = vmul.f32 %v2286, %v2286
      %v2401 = vmul.f32 %v2287, %v2287
      %v2402 = vmul.f32 %v2288, %v2288
      %v2403 = vmul.f32 %v2289, %v2289
      %v2404 = vmul.f32 %v2290, %v2290
      %v2405 = vmul.f32 %v2291, %v2291
      %v2406 = vmul.f32 %v2292, %v2292
      %v2407 = vmul.f32 %v2293, %v2293
      %v2408 = vmul.f32 %v2294, %v2294
      %v2409 = vmul.f32 %v2295, %v2295
      %v2410 = vmul.f32 %v2296, %v2296
      %v2411 = vmul.f32 %v2297, %v2297
      %v2412 = vmul.f32 %v2298, %v2298
      %v2413 = vmul.f32 %v2299, %v2299
      %v2414 = vmul.f32 %v2300, %v2300
      %v2415 = vmul.f32 %v2301, %v2301
      %v2416 = vmul.f32 %v2302, %v2302
      %v2417 = vmul.f32 %v2303, %v2303
      %v2418 = vmul.f32 %v2304, %v2304
      %v2419 = vmul.f32 %v2305, %v2305
      %v2420 = vmul.f32 %v2306, %v2306
      %v2421 = vmul.f32 %v2307, %v2307
      %v2422 = vmul.f32 %v2308, %v2308
      %v2423 = vmul.f32 %v2309, %v2309
      %v2424 = vmul.f32 %v2310, %v2310
      %v2425 = vmul.f32 %v2311, %v2311
      %v2426 = vmul.f32 %v2312, %v2312
      %v2427 = vmul.f32 %v2313, %v2313
      %v2428 = vadd.f32 %v2314, %v2317
      %v2429 = vadd.f32 %v2428, %v2320
      %v2430 = vadd.f32 %v2429, %v2323
      %v2431 = vadd.f32 %v2430, %v2326
      %v2432 = vadd.f32 %v2431, %v2329
      %v2433 = vadd.f32 %v2432, %v2332
      %v2434 = vadd.f32 %v2433, %v2335
      %v2435 = vadd.f32 %v2434, %v2338
      %v2436 = vadd.f32 %v2435, %v2341
      %v2437 = vadd.f32 %v2436, %v2344
      %v2438 = vadd.f32 %v2437, %v2347
      %v2439 = vadd.f32 %v2438, %v2350
      %v2440 = vadd.f32 %v2439, %v2353
      %v2441 = vadd.f32 %v2440, %v2356
      %v2442 = vadd.f32 %v2441, %v2359
      %v2443 = vadd.f32 %v2442, %v2362
      %v2444 = vadd.f32 %v2443, %v2365
      %v2445 = vadd.f32 %v2444, %v2368
      %v2446 = vadd.f32 %v2445, %v2371
      %v2447 = vadd.f32 %v2446, %v2374
      %v2448 = vadd.f32 %v2447, %v2377
      %v2449 = vadd.f32 %v2448, %v2380
      %v2450 = vadd.f32 %v2449, %v2383
      %v2451 = vadd.f32 %v2450, %v2386
      %v2452 = vadd.f32 %v2451, %v2389
      %v2453 = vadd.f32 %v2452, %v2392
      %v2454 = vadd.f32 %v2453, %v2395
      %v2455 = vadd.f32 %v2454, %v2398
      %v2456 = vadd.f32 %v2455, %v2401
      %v2457 = vadd.f32 %v2456, %v2404
      %v2458 = vadd.f32 %v2457, %v2407
      %v2459 = vadd.f32 %v2458, %v2410
      %v2460 = vadd.f32 %v2459, %v2413
      %v2461 = vadd.f32 %v2460, %v2416
      %v2462 = vadd.f32 %v2461, %v2419
      %v2463 = vadd.f32 %v2462, %v2422
      %v2464 = vadd.f32 %v2463, %v2425
      %v2465 = vadd.f32 %v2315, %v2318
      %v2466 = vadd.f32 %v2465, %v2321
      %v2467 = vadd.f32 %v2466, %v2324
      %v2468 = vadd.f32 %v2467, %v2327
      %v2469 = vadd.f32 %v2468, %v2330
      %v2470 = vadd.f32 %v2469, %v2333
      %v2471 = vadd.f32 %v2470, %v2336
      %v2472 = vadd.f32 %v2471, %v2339
      %v2473 = vadd.f32 %v2472, %v2342
      %v2474 = vadd.f32 %v2473, %v2345
      %v2475 = vadd.f32 %v2474, %v2348
      %v2476 = vadd.f32 %v2475, %v2351
      %v2477 = vadd.f32 %v2476, %v2354
      %v2478 = vadd.f32 %v2477, %v2357
      %v2479 = vadd.f32 %v2478, %v2360
      %v2480 = vadd.f32 %v2479, %v2363
      %v2481 = vadd.f32 %v2480, %v2366
      %v2482 = vadd.f32 %v2481, %v2369
      %v2483 = vadd.f32 %v2482, %v2372
      %v2484 = vadd.f32 %v2483, %v2375
      %v2485 = vadd.f32 %v2484, %v2378
      %v2486 = vadd.f32 %v2485, %v2381
      %v2487 = vadd.f32 %v2486, %v2384
      %v2488 = vadd.f32 %v2487, %v2387
      %v2489 = vadd.f32 %v2488, %v2390
      %v2490 = vadd.f32 %v2489, %v2393
      %v2491 = vadd.f32 %v2490, %v2396
      %v2492 = vadd.f32 %v2491, %v2399
      %v2493 = vadd.f32 %v2492, %v2402
      %v2494 = vadd.f32 %v2493, %v2405
      %v2495 = vadd.f32 %v2494, %v2408
      %v2496 = vadd.f32 %v2495, %v2411
      %v2497 = vadd.f32 %v2496, %v2414
      %v2498 = vadd.f32 %v2497, %v2417
      %v2499 = vadd.f32 %v2498, %v2420
      %v2500 = vadd.f32 %v2499, %v2423
      %v2501 = vadd.f32 %v2500, %v2426
      %vm2502 = vcmask 7168
      %v2503 = vsel %vm2502, %v2316, 0.0
      %v2504 = vsel %vm2502, %v2319, 0.0
      %v2505 = vadd.f32 %v2503, %v2504
      %v2506 = vsel %vm2502, %v2322, 0.0
      %v2507 = vadd.f32 %v2505, %v2506
      %v2508 = vsel %vm2502, %v2325, 0.0
      %v2509 = vadd.f32 %v2507, %v2508
      %v2510 = vsel %vm2502, %v2328, 0.0
      %v2511 = vadd.f32 %v2509, %v2510
      %v2512 = vsel %vm2502, %v2331, 0.0
      %v2513 = vadd.f32 %v2511, %v2512
      %v2514 = vsel %vm2502, %v2334, 0.0
      %v2515 = vadd.f32 %v2513, %v2514
      %v2516 = vsel %vm2502, %v2337, 0.0
      %v2517 = vadd.f32 %v2515, %v2516
      %v2518 = vsel %vm2502, %v2340, 0.0
      %v2519 = vadd.f32 %v2517, %v2518
      %v2520 = vsel %vm2502, %v2343, 0.0
      %v2521 = vadd.f32 %v2519, %v2520
      %v2522 = vsel %vm2502, %v2346, 0.0
      %v2523 = vadd.f32 %v2521, %v2522
      %v2524 = vsel %vm2502, %v2349, 0.0
      %v2525 = vadd.f32 %v2523, %v2524
      %v2526 = vsel %vm2502, %v2352, 0.0
      %v2527 = vadd.f32 %v2525, %v2526
      %v2528 = vsel %vm2502, %v2355, 0.0
      %v2529 = vadd.f32 %v2527, %v2528
      %v2530 = vsel %vm2502, %v2358, 0.0
      %v2531 = vadd.f32 %v2529, %v2530
      %v2532 = vsel %vm2502, %v2361, 0.0
      %v2533 = vadd.f32 %v2531, %v2532
      %v2534 = vsel %vm2502, %v2364, 0.0
      %v2535 = vadd.f32 %v2533, %v2534
      %v2536 = vsel %vm2502, %v2367, 0.0
      %v2537 = vadd.f32 %v2535, %v2536
      %v2538 = vsel %vm2502, %v2370, 0.0
      %v2539 = vadd.f32 %v2537, %v2538
      %v2540 = vsel %vm2502, %v2373, 0.0
      %v2541 = vadd.f32 %v2539, %v2540
      %v2542 = vsel %vm2502, %v2376, 0.0
      %v2543 = vadd.f32 %v2541, %v2542
      %v2544 = vsel %vm2502, %v2379, 0.0
      %v2545 = vadd.f32 %v2543, %v2544
      %v2546 = vsel %vm2502, %v2382, 0.0
      %v2547 = vadd.f32 %v2545, %v2546
      %v2548 = vsel %vm2502, %v2385, 0.0
      %v2549 = vadd.f32 %v2547, %v2548
      %v2550 = vsel %vm2502, %v2388, 0.0
      %v2551 = vadd.f32 %v2549, %v2550
      %v2552 = vsel %vm2502, %v2391, 0.0
      %v2553 = vadd.f32 %v2551, %v2552
      %v2554 = vsel %vm2502, %v2394, 0.0
      %v2555 = vadd.f32 %v2553, %v2554
      %v2556 = vsel %vm2502, %v2397, 0.0
      %v2557 = vadd.f32 %v2555, %v2556
      %v2558 = vsel %vm2502, %v2400, 0.0
      %v2559 = vadd.f32 %v2557, %v2558
      %v2560 = vsel %vm2502, %v2403, 0.0
      %v2561 = vadd.f32 %v2559, %v2560
      %v2562 = vsel %vm2502, %v2406, 0.0
      %v2563 = vadd.f32 %v2561, %v2562
      %v2564 = vsel %vm2502, %v2409, 0.0
      %v2565 = vadd.f32 %v2563, %v2564
      %v2566 = vsel %vm2502, %v2412, 0.0
      %v2567 = vadd.f32 %v2565, %v2566
      %v2568 = vsel %vm2502, %v2415, 0.0
      %v2569 = vadd.f32 %v2567, %v2568
      %v2570 = vsel %vm2502, %v2418, 0.0
      %v2571 = vadd.f32 %v2569, %v2570
      %v2572 = vsel %vm2502, %v2421, 0.0
      %v2573 = vadd.f32 %v2571, %v2572
      %v2574 = vsel %vm2502, %v2424, 0.0
      %v2575 = vadd.f32 %v2573, %v2574
      %v2576 = vsel %vm2502, %v2427, 0.0
      %v2577 = vadd.f32 %v2575, %v2576
      %v2578 = vld [vmem:[#allocation2] sm:$0xff]
      %v2579 = vld [vmem:[#allocation2 + $0x8] sm:$0xff]
      %v2580 = vld [vmem:[#allocation2 + $0x10] sm:$0xff]
      %v2581 = vadd.f32 %v2578, %v2464
      %v2582 = vadd.f32 %v2579, %v2501
      %v2583 = vadd.f32 %v2580, %v2577
      %2584 = vst [vmem:[#allocation2] sm:$0xff] %v2581
      %2585 = vst [vmem:[#allocation2 + $0x8] sm:$0xff] %v2582
      %2586 = vst.msk [vmem:[#allocation2 + $0x10] sm:$0xff] %vm2502, %v2583
    $region21: #{tpu_custom_call.1} parent=1 // pred_fallthru
      _
    // Predicated region
    $region22: #{tpu_custom_call.1} parent=1 // pred_check
      _
    $region23: #{tpu_custom_call.1} parent=1 // pred_check_branch
      %2588 = sbr.rel (0) target = $region25
    $region24: #{tpu_custom_call.1} parent=1 // pred_region
      %s2590 = ssub.s32 384, 384
      %2591 = vsyncadd [#allocation3], %s2590
      %s2593 = sshll.u32 [#allocation2], 4
      %s2594 = int_to_ptr.vmem [resolvable:$true] %s2593
      %2596 = dma.vmem_to_hbm [thread:$0]  %s2594, 384, %s2, [#allocation3]
    $region25: #{tpu_custom_call.1} parent=1 // pred_fallthru
      _
    // Predicated region
    $region26: #{tpu_custom_call.1} parent=1 // pred_check
      _
    $region27: #{tpu_custom_call.1} parent=1 // pred_check_branch
      %2598 = sbr.rel (0) target = $region29
    $region28: #{tpu_custom_call.1} parent=1 // pred_region
      %2599 = dma.done [#allocation3], 384
    $region29: #{tpu_custom_call.1} parent=1 // pred_fallthru
      _
    %2600 = vsyncpa [#allocation3], 1

</llo_original>
